<compile_context>
chip_gen: v7x
topology: tpu7x:2x2x1
jax: 0.10.0
libtpu: 0.0.40
codegen_flags: <defaults>
</compile_context>

<pallas_src>
import numpy as np
import jax
import jax.numpy as jnp
from jax.experimental import pallas as pl
from jax.experimental.pallas import tpu as pltpu


def _round_up(x, m):
    return ((x + m - 1) // m) * m


def embedding_layer_forward(x, table, offsets, *, rows_per_tile=2048,
                            split_terms=3):
    """x: (B, F) int32, table: (V, D) float, offsets: (F,) int32 ->
    (B, F, D) table.dtype  (== table[x + offsets[None, :]]).

    split_terms: number of bf16 planes the f32 table is split into for the
      MXU gather.  3 -> f32-exact (<1 ulp), 2 -> ~2^-16 rel error, 1 -> bf16.
    """
    B, F = x.shape
    V, D = table.shape
    N = B * F
    out_dtype = table.dtype

    # --- fold per-field offsets into flat indices (one fused XLA add) -----
    # NOTE: out-of-range indices (idx < 0 or >= V) silently produce a zero
    # row with the one-hot gather (torch.nn.Embedding would raise instead).
    flat_idx = (x.astype(jnp.int32)
                + offsets.astype(jnp.int32)[None, :]).reshape(-1)      # (N,)

    # --- lane packing: keep the output writeback 128-lane dense -----------
    if D < 128 and 128 % D == 0:
        G, Dp = 128 // D, D                 # pack G rows per 128-lane row
    else:
        G, Dp = 1, _round_up(D, 128)        # pad feature dim to lane width

    # --- bf16 split of the table (exactness vs. MXU passes trade-off) -----
    tab = table if Dp == D else jnp.pad(table, ((0, 0), (0, Dp - D)))
    if tab.dtype == jnp.bfloat16:
        n_terms = 1
        tab_split = tab[None]                                  # (1, V, Dp)
    else:
        n_terms = max(1, int(split_terms))
        terms, resid = [], tab.astype(jnp.float32)
        for _ in range(n_terms):
            t = resid.astype(jnp.bfloat16)
            terms.append(t)
            resid = resid - t.astype(jnp.float32)
        tab_split = jnp.stack(terms, axis=0)                   # (T, V, Dp) bf16

    # --- generation-aware VMEM budget --------------------------------------
    try:
        phys_vmem = int(pltpu.get_tpu_info().vmem_capacity_bytes)
    except Exception:
        phys_vmem = 64 << 20                 # conservative (v7x per-TC VMEM)
    vmem_cap = min(int(phys_vmem * 0.70), 96 << 20)

    tab_bytes = n_terms * V * Dp * 2         # resident bf16 planes

    def vmem_need(tbp, table_bufs):
        return (table_bufs * tab_bytes       # resident table copies
                + 2 * tbp * G * 4            # double-buffered index tiles
                + 2 * tbp * G * Dp * 4       # double-buffered output tiles
                + tbp * V * 4                # iota (int32)
                + tbp * V * 2                # one-hot (bf16)
                + 2 * tbp * Dp * 4)          # matmul result / accumulator

    # --- tile sizing: big tiles, shrink to fit the VMEM budget -------------
    P = pl.cdiv(N, G)                                      # packed rows needed
    TBp = max(8, ((rows_per_tile // G) // 8) * 8)
    while TBp > 8 and 1.5 * vmem_need(TBp, 2) > vmem_cap:
        TBp = max(8, ((TBp // 2) // 8) * 8)
    if 1.5 * vmem_need(8, 2) > vmem_cap:
        # TODO(synk): for vocabularies too large to keep VMEM-resident, add a
        # manual double-buffered DMA row-gather (table in pl.ANY +
        # pltpu.make_async_copy driven by scalar-prefetched indices).
        raise NotImplementedError("embedding table too large for the "
                                  "VMEM-resident one-hot gather path")
    # Give the v7x megacore (2 TCs) at least 2 grid steps when there is work.
    if P >= 16 and P <= TBp:
        TBp = max(8, _round_up(pl.cdiv(P, 2), 8))

    if P <= TBp:
        TBp, P_pad = P, P                     # single tile == full array
    else:
        P_pad = _round_up(P, TBp)
    N_pad = P_pad * G

    # Padded rows use index 0 (valid); they are sliced off at the end.
    idx = jnp.zeros((N_pad,), jnp.int32).at[:N].set(flat_idx).reshape(P_pad, G)

    vmem_limit = int(min(vmem_cap,
                         max(32 << 20, int(1.5 * vmem_need(TBp, 2)))))

    # --- kernel -------------------------------------------------------------
    def gather_kernel(idx_ref, tab_ref, out_ref):
        rows = idx_ref.shape[0]
        # One iota shared by all packing slots (hoisted; JAX does not CSE it).
        iota = jax.lax.broadcasted_iota(jnp.int32, (rows, V), 1)
        tabs = [tab_ref[t] for t in range(n_terms)]        # (V, Dp) bf16 each
        for g in range(G):                                 # static, small
            ids = idx_ref[:, pl.ds(g, 1)]                  # (rows, 1) int32
            onehot = (iota == ids).astype(jnp.bfloat16)    # exact 0/1 in bf16
            res = jnp.dot(onehot, tabs[0],
                          preferred_element_type=jnp.float32)
            for t in range(1, n_terms):
                res = res + jnp.dot(onehot, tabs[t],
                                    preferred_element_type=jnp.float32)
            # Direct static lane-slice store (no per-tile concat/relayout).
            out_ref[:, g * Dp:(g + 1) * Dp] = res.astype(out_ref.dtype)

    def call(single_buffer_table):
        table_spec_kwargs = {}
        if single_buffer_table:
            # Constant index_map -> single-buffer the resident table.
            table_spec_kwargs["pipeline_mode"] = pl.Buffered(1)
        return pl.pallas_call(
            gather_kernel,
            out_shape=jax.ShapeDtypeStruct((P_pad, G * Dp), out_dtype),
            grid=(P_pad // TBp,),
            in_specs=[
                pl.BlockSpec((TBp, G), lambda i: (i, 0)),        # packed idx
                pl.BlockSpec((n_terms, V, Dp), lambda i: (0, 0, 0),
                             **table_spec_kwargs),               # resident tab
            ],
            out_specs=pl.BlockSpec((TBp, G * Dp), lambda i: (i, 0)),
            compiler_params=pltpu.CompilerParams(
                dimension_semantics=("parallel",),
                vmem_limit_bytes=vmem_limit),
        )(idx, tab_split)

    try:
        out = call(True)
    except Exception:
        out = call(False)   # fallback if Buffered(1) is unsupported here

    # (P_pad, G*Dp) -> (N_pad, Dp) -> slice -> (B, F, D): row-major views.
    return out.reshape(N_pad, Dp)[:N, :D].reshape(B, F, D)


def make_params(field_dims, embed_dim, key):
    """Deterministic parameter init matching torch.nn.Embedding +
    xavier_uniform_ on a (num_embeddings, embed_dim) weight."""
    num_embeddings = int(sum(field_dims))
    bound = float(np.sqrt(6.0 / (num_embeddings + embed_dim)))
    table = jax.random.uniform(
        key, (num_embeddings, embed_dim),
        minval=-bound, maxval=bound, dtype=jnp.float32)
    offsets = jnp.asarray(
        np.array((0, *np.cumsum(field_dims)[:-1]), dtype=np.int32))
    return table, offsets


if __name__ == "__main__":
    key = jax.random.PRNGKey(0)
    k_tab, k_x = jax.random.split(key)

    field_dims = (3, 5, 7, 9)     # num_fields = 4, vocab = 24
    embed_dim = 32
    batch = 2
    num_fields = len(field_dims)

    table, offsets = make_params(field_dims, embed_dim, k_tab)

    # x[:, f] must be a valid index within field f (0 <= idx < field_dims[f]).
    maxvals = jnp.asarray(field_dims, dtype=jnp.int32)[None, :]
    x = (jax.random.randint(k_x, (batch, num_fields), 0, 10 ** 6,
                            dtype=jnp.int32) % maxvals).astype(jnp.int32)

    out = embedding_layer_forward(x, table, offsets)
    out = jax.block_until_ready(out)

    # Pure-JAX reference.
    ref = jnp.take(table, x + offsets[None, :], axis=0)
    assert out.shape == (batch, num_fields, embed_dim)
    np.testing.assert_allclose(np.asarray(out), np.asarray(ref),
                               rtol=1e-6, atol=1e-6)

    print("KERNEL_OK")
</pallas_src>

<mosaic_0001>
module attributes {stable_mosaic.version = 11 : i64} {
  func.func @gather_kernel(%arg0: i32, %arg1: memref<2x4xi32, #tpu.memory_space<vmem>>, %arg2: memref<3x24x32xbf16, #tpu.memory_space<vmem>>, %arg3: memref<2x128xf32, #tpu.memory_space<vmem>>) attributes {dimension_semantics = [#tpu.dimension_semantics<parallel>], iteration_bounds = array<i64: 1>, scalar_prefetch = 0 : i64, scratch_operands = 0 : i64, tpu.core_type = #tpu.core_type<tc>, window_params = [{transform_indices = @transform_0, window_bounds = array<i64: 2, 4>}, {pipeline_mode = #tpu.pipeline_mode<synchronous>, transform_indices = @transform_1, window_bounds = array<i64: 3, 24, 32>}, {transform_indices = @transform_2, window_bounds = array<i64: 2, 128>}]} {
    %0 = tpu.iota {dimensions = array<i32: 1>} : vector<2x24xi32>
    %c0 = arith.constant 0 : index
    %c0_0 = arith.constant 0 : index
    %c0_1 = arith.constant 0 : index
    %1 = vector.load %arg2[%c0, %c0_0, %c0_1] : memref<3x24x32xbf16, #tpu.memory_space<vmem>>, vector<1x24x32xbf16>
    %2 = vector.shape_cast %1 : vector<1x24x32xbf16> to vector<24x32xbf16>
    %c1 = arith.constant 1 : index
    %c0_2 = arith.constant 0 : index
    %c0_3 = arith.constant 0 : index
    %3 = vector.load %arg2[%c1, %c0_2, %c0_3] : memref<3x24x32xbf16, #tpu.memory_space<vmem>>, vector<1x24x32xbf16>
    %4 = vector.shape_cast %3 : vector<1x24x32xbf16> to vector<24x32xbf16>
    %c2 = arith.constant 2 : index
    %c0_4 = arith.constant 0 : index
    %c0_5 = arith.constant 0 : index
    %5 = vector.load %arg2[%c2, %c0_4, %c0_5] : memref<3x24x32xbf16, #tpu.memory_space<vmem>>, vector<1x24x32xbf16>
    %6 = vector.shape_cast %5 : vector<1x24x32xbf16> to vector<24x32xbf16>
    %c0_6 = arith.constant 0 : index
    %c0_7 = arith.constant 0 : index
    %7 = vector.load %arg1[%c0_6, %c0_7] : memref<2x4xi32, #tpu.memory_space<vmem>>, vector<2x1xi32>
    %8 = vector.broadcast %7 : vector<2x1xi32> to vector<2x24xi32>
    %9 = arith.cmpi eq, %0, %8 : vector<2x24xi32>
    %10 = arith.extui %9 : vector<2x24xi1> to vector<2x24xi32>
    %11 = arith.sitofp %10 : vector<2x24xi32> to vector<2x24xf32>
    %12 = arith.truncf %11 : vector<2x24xf32> to vector<2x24xbf16>
    %cst = arith.constant dense<0.000000e+00> : vector<2x32xf32>
    %13 = tpu.matmul %12, %2, %cst {dimension_numbers = #tpu.dot_dimension_numbers<[1], [0], [0], [1], [0, 0, 1, 1], [], []>} : vector<2x24xbf16>, vector<24x32xbf16>, vector<2x32xf32> -> vector<2x32xf32>
    %cst_8 = arith.constant dense<0.000000e+00> : vector<2x32xf32>
    %14 = tpu.matmul %12, %4, %cst_8 {dimension_numbers = #tpu.dot_dimension_numbers<[1], [0], [0], [1], [0, 0, 1, 1], [], []>} : vector<2x24xbf16>, vector<24x32xbf16>, vector<2x32xf32> -> vector<2x32xf32>
    %15 = arith.addf %13, %14 : vector<2x32xf32>
    %cst_9 = arith.constant dense<0.000000e+00> : vector<2x32xf32>
    %16 = tpu.matmul %12, %6, %cst_9 {dimension_numbers = #tpu.dot_dimension_numbers<[1], [0], [0], [1], [0, 0, 1, 1], [], []>} : vector<2x24xbf16>, vector<24x32xbf16>, vector<2x32xf32> -> vector<2x32xf32>
    %17 = arith.addf %15, %16 : vector<2x32xf32>
    %c0_10 = arith.constant 0 : index
    %c0_11 = arith.constant 0 : index
    %18 = vector.load %arg3[%c0_10, %c0_11] : memref<2x128xf32, #tpu.memory_space<vmem>>, vector<2x32xf32>
    tpu.vector_store %arg3[%c0_10, %c0_11], %17 {strides = array<i32>} : memref<2x128xf32, #tpu.memory_space<vmem>>, vector<2x32xf32>,
    %c0_12 = arith.constant 0 : index
    %c1_13 = arith.constant 1 : index
    %19 = vector.load %arg1[%c0_12, %c1_13] : memref<2x4xi32, #tpu.memory_space<vmem>>, vector<2x1xi32>
    %20 = vector.broadcast %19 : vector<2x1xi32> to vector<2x24xi32>
    %21 = arith.cmpi eq, %0, %20 : vector<2x24xi32>
    %22 = arith.extui %21 : vector<2x24xi1> to vector<2x24xi32>
    %23 = arith.sitofp %22 : vector<2x24xi32> to vector<2x24xf32>
    %24 = arith.truncf %23 : vector<2x24xf32> to vector<2x24xbf16>
    %cst_14 = arith.constant dense<0.000000e+00> : vector<2x32xf32>
    %25 = tpu.matmul %24, %2, %cst_14 {dimension_numbers = #tpu.dot_dimension_numbers<[1], [0], [0], [1], [0, 0, 1, 1], [], []>} : vector<2x24xbf16>, vector<24x32xbf16>, vector<2x32xf32> -> vector<2x32xf32>
    %cst_15 = arith.constant dense<0.000000e+00> : vector<2x32xf32>
    %26 = tpu.matmul %24, %4, %cst_15 {dimension_numbers = #tpu.dot_dimension_numbers<[1], [0], [0], [1], [0, 0, 1, 1], [], []>} : vector<2x24xbf16>, vector<24x32xbf16>, vector<2x32xf32> -> vector<2x32xf32>
    %27 = arith.addf %25, %26 : vector<2x32xf32>
    %cst_16 = arith.constant dense<0.000000e+00> : vector<2x32xf32>
    %28 = tpu.matmul %24, %6, %cst_16 {dimension_numbers = #tpu.dot_dimension_numbers<[1], [0], [0], [1], [0, 0, 1, 1], [], []>} : vector<2x24xbf16>, vector<24x32xbf16>, vector<2x32xf32> -> vector<2x32xf32>
    %29 = arith.addf %27, %28 : vector<2x32xf32>
    %c0_17 = arith.constant 0 : index
    %c32 = arith.constant 32 : index
    %30 = vector.load %arg3[%c0_17, %c32] : memref<2x128xf32, #tpu.memory_space<vmem>>, vector<2x32xf32>
    tpu.vector_store %arg3[%c0_17, %c32], %29 {strides = array<i32>} : memref<2x128xf32, #tpu.memory_space<vmem>>, vector<2x32xf32>,
    %c0_18 = arith.constant 0 : index
    %c2_19 = arith.constant 2 : index
    %31 = vector.load %arg1[%c0_18, %c2_19] : memref<2x4xi32, #tpu.memory_space<vmem>>, vector<2x1xi32>
    %32 = vector.broadcast %31 : vector<2x1xi32> to vector<2x24xi32>
    %33 = arith.cmpi eq, %0, %32 : vector<2x24xi32>
    %34 = arith.extui %33 : vector<2x24xi1> to vector<2x24xi32>
    %35 = arith.sitofp %34 : vector<2x24xi32> to vector<2x24xf32>
    %36 = arith.truncf %35 : vector<2x24xf32> to vector<2x24xbf16>
    %cst_20 = arith.constant dense<0.000000e+00> : vector<2x32xf32>
    %37 = tpu.matmul %36, %2, %cst_20 {dimension_numbers = #tpu.dot_dimension_numbers<[1], [0], [0], [1], [0, 0, 1, 1], [], []>} : vector<2x24xbf16>, vector<24x32xbf16>, vector<2x32xf32> -> vector<2x32xf32>
    %cst_21 = arith.constant dense<0.000000e+00> : vector<2x32xf32>
    %38 = tpu.matmul %36, %4, %cst_21 {dimension_numbers = #tpu.dot_dimension_numbers<[1], [0], [0], [1], [0, 0, 1, 1], [], []>} : vector<2x24xbf16>, vector<24x32xbf16>, vector<2x32xf32> -> vector<2x32xf32>
    %39 = arith.addf %37, %38 : vector<2x32xf32>
    %cst_22 = arith.constant dense<0.000000e+00> : vector<2x32xf32>
    %40 = tpu.matmul %36, %6, %cst_22 {dimension_numbers = #tpu.dot_dimension_numbers<[1], [0], [0], [1], [0, 0, 1, 1], [], []>} : vector<2x24xbf16>, vector<24x32xbf16>, vector<2x32xf32> -> vector<2x32xf32>
    %41 = arith.addf %39, %40 : vector<2x32xf32>
    %c0_23 = arith.constant 0 : index
    %c64 = arith.constant 64 : index
    %42 = vector.load %arg3[%c0_23, %c64] : memref<2x128xf32, #tpu.memory_space<vmem>>, vector<2x32xf32>
    tpu.vector_store %arg3[%c0_23, %c64], %41 {strides = array<i32>} : memref<2x128xf32, #tpu.memory_space<vmem>>, vector<2x32xf32>,
    %c0_24 = arith.constant 0 : index
    %c3 = arith.constant 3 : index
    %43 = vector.load %arg1[%c0_24, %c3] : memref<2x4xi32, #tpu.memory_space<vmem>>, vector<2x1xi32>
    %44 = vector.broadcast %43 : vector<2x1xi32> to vector<2x24xi32>
    %45 = arith.cmpi eq, %0, %44 : vector<2x24xi32>
    %46 = arith.extui %45 : vector<2x24xi1> to vector<2x24xi32>
    %47 = arith.sitofp %46 : vector<2x24xi32> to vector<2x24xf32>
    %48 = arith.truncf %47 : vector<2x24xf32> to vector<2x24xbf16>
    %cst_25 = arith.constant dense<0.000000e+00> : vector<2x32xf32>
    %49 = tpu.matmul %48, %2, %cst_25 {dimension_numbers = #tpu.dot_dimension_numbers<[1], [0], [0], [1], [0, 0, 1, 1], [], []>} : vector<2x24xbf16>, vector<24x32xbf16>, vector<2x32xf32> -> vector<2x32xf32>
    %cst_26 = arith.constant dense<0.000000e+00> : vector<2x32xf32>
    %50 = tpu.matmul %48, %4, %cst_26 {dimension_numbers = #tpu.dot_dimension_numbers<[1], [0], [0], [1], [0, 0, 1, 1], [], []>} : vector<2x24xbf16>, vector<24x32xbf16>, vector<2x32xf32> -> vector<2x32xf32>
    %51 = arith.addf %49, %50 : vector<2x32xf32>
    %cst_27 = arith.constant dense<0.000000e+00> : vector<2x32xf32>
    %52 = tpu.matmul %48, %6, %cst_27 {dimension_numbers = #tpu.dot_dimension_numbers<[1], [0], [0], [1], [0, 0, 1, 1], [], []>} : vector<2x24xbf16>, vector<24x32xbf16>, vector<2x32xf32> -> vector<2x32xf32>
    %53 = arith.addf %51, %52 : vector<2x32xf32>
    %c0_28 = arith.constant 0 : index
    %c96 = arith.constant 96 : index
    %54 = vector.load %arg3[%c0_28, %c96] : memref<2x128xf32, #tpu.memory_space<vmem>>, vector<2x32xf32>
    tpu.vector_store %arg3[%c0_28, %c96], %53 {strides = array<i32>} : memref<2x128xf32, #tpu.memory_space<vmem>>, vector<2x32xf32>,
    return
  }
  func.func @transform_0(%arg0: i32) -> (i32, i32) {
    %c0_i32 = arith.constant 0 : i32
    %c0_i32_0 = arith.constant 0 : i32
    return %arg0, %c0_i32 : i32, i32
  }
  func.func @transform_1(%arg0: i32) -> (i32, i32, i32) {
    %c0_i32 = arith.constant 0 : i32
    %c0_i32_0 = arith.constant 0 : i32
    %c0_i32_1 = arith.constant 0 : i32
    %c0_i32_2 = arith.constant 0 : i32
    return %c0_i32, %c0_i32_0, %c0_i32_1 : i32, i32, i32
  }
  func.func @transform_2(%arg0: i32) -> (i32, i32) {
    %c0_i32 = arith.constant 0 : i32
    %c0_i32_0 = arith.constant 0 : i32
    return %arg0, %c0_i32 : i32, i32
  }
}

module attributes {stable_mosaic.version = 11 : i64} {
  func.func @gather_kernel(%arg0: i32, %arg1: memref<2x4xi32, #tpu.memory_space<vmem>>, %arg2: memref<3x24x32xbf16, #tpu.memory_space<vmem>>, %arg3: memref<2x128xf32, #tpu.memory_space<vmem>>) attributes {dimension_semantics = [#tpu.dimension_semantics<parallel>], iteration_bounds = array<i64: 1>, scalar_prefetch = 0 : i64, scratch_operands = 0 : i64, tpu.core_type = #tpu.core_type<tc>, window_params = [{transform_indices = @transform_0, window_bounds = array<i64: 2, 4>}, {pipeline_mode = #tpu.pipeline_mode<synchronous>, transform_indices = @transform_1, window_bounds = array<i64: 3, 24, 32>}, {transform_indices = @transform_2, window_bounds = array<i64: 2, 128>}]} {
    %0 = tpu.iota {dimensions = array<i32: 1>} : vector<2x24xi32>
    %c0 = arith.constant 0 : index
    %c0_0 = arith.constant 0 : index
    %c0_1 = arith.constant 0 : index
    %1 = vector.load %arg2[%c0, %c0_0, %c0_1] : memref<3x24x32xbf16, #tpu.memory_space<vmem>>, vector<1x24x32xbf16>
    %2 = vector.shape_cast %1 : vector<1x24x32xbf16> to vector<24x32xbf16>
    %c1 = arith.constant 1 : index
    %c0_2 = arith.constant 0 : index
    %c0_3 = arith.constant 0 : index
    %3 = vector.load %arg2[%c1, %c0_2, %c0_3] : memref<3x24x32xbf16, #tpu.memory_space<vmem>>, vector<1x24x32xbf16>
    %4 = vector.shape_cast %3 : vector<1x24x32xbf16> to vector<24x32xbf16>
    %c2 = arith.constant 2 : index
    %c0_4 = arith.constant 0 : index
    %c0_5 = arith.constant 0 : index
    %5 = vector.load %arg2[%c2, %c0_4, %c0_5] : memref<3x24x32xbf16, #tpu.memory_space<vmem>>, vector<1x24x32xbf16>
    %6 = vector.shape_cast %5 : vector<1x24x32xbf16> to vector<24x32xbf16>
    %c0_6 = arith.constant 0 : index
    %c0_7 = arith.constant 0 : index
    %7 = vector.load %arg1[%c0_6, %c0_7] : memref<2x4xi32, #tpu.memory_space<vmem>>, vector<2x1xi32>
    %8 = vector.broadcast %7 : vector<2x1xi32> to vector<2x24xi32>
    %9 = arith.cmpi eq, %0, %8 : vector<2x24xi32>
    %10 = arith.extui %9 : vector<2x24xi1> to vector<2x24xi32>
    %11 = arith.sitofp %10 : vector<2x24xi32> to vector<2x24xf32>
    %12 = arith.truncf %11 : vector<2x24xf32> to vector<2x24xbf16>
    %cst = arith.constant dense<0.000000e+00> : vector<2x32xf32>
    %13 = tpu.matmul %12, %2, %cst {dimension_numbers = #tpu.dot_dimension_numbers<[1], [0], [0], [1], [0, 0, 1, 1], [], []>} : vector<2x24xbf16>, vector<24x32xbf16>, vector<2x32xf32> -> vector<2x32xf32>
    %cst_8 = arith.constant dense<0.000000e+00> : vector<2x32xf32>
    %14 = tpu.matmul %12, %4, %cst_8 {dimension_numbers = #tpu.dot_dimension_numbers<[1], [0], [0], [1], [0, 0, 1, 1], [], []>} : vector<2x24xbf16>, vector<24x32xbf16>, vector<2x32xf32> -> vector<2x32xf32>
    %15 = arith.addf %13, %14 : vector<2x32xf32>
    %cst_9 = arith.constant dense<0.000000e+00> : vector<2x32xf32>
    %16 = tpu.matmul %12, %6, %cst_9 {dimension_numbers = #tpu.dot_dimension_numbers<[1], [0], [0], [1], [0, 0, 1, 1], [], []>} : vector<2x24xbf16>, vector<24x32xbf16>, vector<2x32xf32> -> vector<2x32xf32>
    %17 = arith.addf %15, %16 : vector<2x32xf32>
    %c0_10 = arith.constant 0 : index
    %c0_11 = arith.constant 0 : index
    %18 = vector.load %arg3[%c0_10, %c0_11] : memref<2x128xf32, #tpu.memory_space<vmem>>, vector<2x32xf32>
    tpu.vector_store %arg3[%c0_10, %c0_11], %17 {strides = array<i32>} : memref<2x128xf32, #tpu.memory_space<vmem>>, vector<2x32xf32>,
    %c0_12 = arith.constant 0 : index
    %c1_13 = arith.constant 1 : index
    %19 = vector.load %arg1[%c0_12, %c1_13] : memref<2x4xi32, #tpu.memory_space<vmem>>, vector<2x1xi32>
    %20 = vector.broadcast %19 : vector<2x1xi32> to vector<2x24xi32>
    %21 = arith.cmpi eq, %0, %20 : vector<2x24xi32>
    %22 = arith.extui %21 : vector<2x24xi1> to vector<2x24xi32>
    %23 = arith.sitofp %22 : vector<2x24xi32> to vector<2x24xf32>
    %24 = arith.truncf %23 : vector<2x24xf32> to vector<2x24xbf16>
    %cst_14 = arith.constant dense<0.000000e+00> : vector<2x32xf32>
    %25 = tpu.matmul %24, %2, %cst_14 {dimension_numbers = #tpu.dot_dimension_numbers<[1], [0], [0], [1], [0, 0, 1, 1], [], []>} : vector<2x24xbf16>, vector<24x32xbf16>, vector<2x32xf32> -> vector<2x32xf32>
    %cst_15 = arith.constant dense<0.000000e+00> : vector<2x32xf32>
    %26 = tpu.matmul %24, %4, %cst_15 {dimension_numbers = #tpu.dot_dimension_numbers<[1], [0], [0], [1], [0, 0, 1, 1], [], []>} : vector<2x24xbf16>, vector<24x32xbf16>, vector<2x32xf32> -> vector<2x32xf32>
    %27 = arith.addf %25, %26 : vector<2x32xf32>
    %cst_16 = arith.constant dense<0.000000e+00> : vector<2x32xf32>
    %28 = tpu.matmul %24, %6, %cst_16 {dimension_numbers = #tpu.dot_dimension_numbers<[1], [0], [0], [1], [0, 0, 1, 1], [], []>} : vector<2x24xbf16>, vector<24x32xbf16>, vector<2x32xf32> -> vector<2x32xf32>
    %29 = arith.addf %27, %28 : vector<2x32xf32>
    %c0_17 = arith.constant 0 : index
    %c32 = arith.constant 32 : index
    %30 = vector.load %arg3[%c0_17, %c32] : memref<2x128xf32, #tpu.memory_space<vmem>>, vector<2x32xf32>
    tpu.vector_store %arg3[%c0_17, %c32], %29 {strides = array<i32>} : memref<2x128xf32, #tpu.memory_space<vmem>>, vector<2x32xf32>,
    %c0_18 = arith.constant 0 : index
    %c2_19 = arith.constant 2 : index
    %31 = vector.load %arg1[%c0_18, %c2_19] : memref<2x4xi32, #tpu.memory_space<vmem>>, vector<2x1xi32>
    %32 = vector.broadcast %31 : vector<2x1xi32> to vector<2x24xi32>
    %33 = arith.cmpi eq, %0, %32 : vector<2x24xi32>
    %34 = arith.extui %33 : vector<2x24xi1> to vector<2x24xi32>
    %35 = arith.sitofp %34 : vector<2x24xi32> to vector<2x24xf32>
    %36 = arith.truncf %35 : vector<2x24xf32> to vector<2x24xbf16>
    %cst_20 = arith.constant dense<0.000000e+00> : vector<2x32xf32>
    %37 = tpu.matmul %36, %2, %cst_20 {dimension_numbers = #tpu.dot_dimension_numbers<[1], [0], [0], [1], [0, 0, 1, 1], [], []>} : vector<2x24xbf16>, vector<24x32xbf16>, vector<2x32xf32> -> vector<2x32xf32>
    %cst_21 = arith.constant dense<0.000000e+00> : vector<2x32xf32>
    %38 = tpu.matmul %36, %4, %cst_21 {dimension_numbers = #tpu.dot_dimension_numbers<[1], [0], [0], [1], [0, 0, 1, 1], [], []>} : vector<2x24xbf16>, vector<24x32xbf16>, vector<2x32xf32> -> vector<2x32xf32>
    %39 = arith.addf %37, %38 : vector<2x32xf32>
    %cst_22 = arith.constant dense<0.000000e+00> : vector<2x32xf32>
    %40 = tpu.matmul %36, %6, %cst_22 {dimension_numbers = #tpu.dot_dimension_numbers<[1], [0], [0], [1], [0, 0, 1, 1], [], []>} : vector<2x24xbf16>, vector<24x32xbf16>, vector<2x32xf32> -> vector<2x32xf32>
    %41 = arith.addf %39, %40 : vector<2x32xf32>
    %c0_23 = arith.constant 0 : index
    %c64 = arith.constant 64 : index
    %42 = vector.load %arg3[%c0_23, %c64] : memref<2x128xf32, #tpu.memory_space<vmem>>, vector<2x32xf32>
    tpu.vector_store %arg3[%c0_23, %c64], %41 {strides = array<i32>} : memref<2x128xf32, #tpu.memory_space<vmem>>, vector<2x32xf32>,
    %c0_24 = arith.constant 0 : index
    %c3 = arith.constant 3 : index
    %43 = vector.load %arg1[%c0_24, %c3] : memref<2x4xi32, #tpu.memory_space<vmem>>, vector<2x1xi32>
    %44 = vector.broadcast %43 : vector<2x1xi32> to vector<2x24xi32>
    %45 = arith.cmpi eq, %0, %44 : vector<2x24xi32>
    %46 = arith.extui %45 : vector<2x24xi1> to vector<2x24xi32>
    %47 = arith.sitofp %46 : vector<2x24xi32> to vector<2x24xf32>
    %48 = arith.truncf %47 : vector<2x24xf32> to vector<2x24xbf16>
    %cst_25 = arith.constant dense<0.000000e+00> : vector<2x32xf32>
    %49 = tpu.matmul %48, %2, %cst_25 {dimension_numbers = #tpu.dot_dimension_numbers<[1], [0], [0], [1], [0, 0, 1, 1], [], []>} : vector<2x24xbf16>, vector<24x32xbf16>, vector<2x32xf32> -> vector<2x32xf32>
    %cst_26 = arith.constant dense<0.000000e+00> : vector<2x32xf32>
    %50 = tpu.matmul %48, %4, %cst_26 {dimension_numbers = #tpu.dot_dimension_numbers<[1], [0], [0], [1], [0, 0, 1, 1], [], []>} : vector<2x24xbf16>, vector<24x32xbf16>, vector<2x32xf32> -> vector<2x32xf32>
    %51 = arith.addf %49, %50 : vector<2x32xf32>
    %cst_27 = arith.constant dense<0.000000e+00> : vector<2x32xf32>
    %52 = tpu.matmul %48, %6, %cst_27 {dimension_numbers = #tpu.dot_dimension_numbers<[1], [0], [0], [1], [0, 0, 1, 1], [], []>} : vector<2x24xbf16>, vector<24x32xbf16>, vector<2x32xf32> -> vector<2x32xf32>
    %53 = arith.addf %51, %52 : vector<2x32xf32>
    %c0_28 = arith.constant 0 : index
    %c96 = arith.constant 96 : index
    %54 = vector.load %arg3[%c0_28, %c96] : memref<2x128xf32, #tpu.memory_space<vmem>>, vector<2x32xf32>
    tpu.vector_store %arg3[%c0_28, %c96], %53 {strides = array<i32>} : memref<2x128xf32, #tpu.memory_space<vmem>>, vector<2x32xf32>,
    return
  }
  func.func @transform_0(%arg0: i32) -> (i32, i32) {
    %c0_i32 = arith.constant 0 : i32
    %c0_i32_0 = arith.constant 0 : i32
    return %arg0, %c0_i32 : i32, i32
  }
  func.func @transform_1(%arg0: i32) -> (i32, i32, i32) {
    %c0_i32 = arith.constant 0 : i32
    %c0_i32_0 = arith.constant 0 : i32
    %c0_i32_1 = arith.constant 0 : i32
    %c0_i32_2 = arith.constant 0 : i32
    return %c0_i32, %c0_i32_0, %c0_i32_1 : i32, i32, i32
  }
  func.func @transform_2(%arg0: i32) -> (i32, i32) {
    %c0_i32 = arith.constant 0 : i32
    %c0_i32_0 = arith.constant 0 : i32
    return %arg0, %c0_i32 : i32, i32
  }
}

</mosaic_0001>

<llo_original>
// kernel: tpu_custom_call.1
$region0: #{tpu_custom_call.1}
  #allocation0 [shape = 'u32[]', space=smem, size = 0x4, offset = 0x4, fixed_abs, tag = 'smem constant byte address 0x4 - core index']
  #allocation1 [shape = 'u32[144,128]{1,0:T(1,128)}', space=vmem, size = 0x12000, scoped, tag = 'internal scratch']
  %s0 = inlined_call_operand.hbm [shape: s32[2,4], index: 0, kind: input, shape index: {}]
  %s1 = inlined_call_operand.hbm [shape: bf16[3,24,32], index: 1, kind: input, shape index: {}]
  %s2 = inlined_call_operand.hbm [shape: f32[2,128], index: 2, kind: output, shape index: {}]
  %s3 = sld [smem:[#allocation0]]
  $region26: #{tpu_custom_call.1} parent=0
    _
  %s5 = ssub.s32 1, %s3
  %s6 = scalar_select 0, %s5, %s3
  $region1: #{tpu_custom_call.1} parent=0
    #allocation2 [shape = 'u8[1024]{0}', space=vmem, size = 0x400, scoped, tag = 'input window, operand 0, single buffered']
    #allocation3 [shape = 's32[1]{0}', space=sflag, size = 0x4, scoped, tag = 'scoped memory for tpu_custom_call.1']
    #allocation4 [shape = 's32[1]{0}', space=sflag, size = 0x4, scoped, tag = 'scoped memory for tpu_custom_call.1']
    #allocation5 [shape = 'u8[18432]{0}', space=vmem, size = 0x4800, scoped, tag = 'input window, operand 1, single buffered']
    #allocation6 [shape = 's32[1]{0}', space=sflag, size = 0x4, scoped, tag = 'scoped memory for tpu_custom_call.1']
    #allocation7 [shape = 'u8[1024]{0}', space=vmem, size = 0x400, scoped, tag = 'output window, operand 0, single buffered']
    %7 = vsyncpa [#allocation3], 0
    %8 = vsyncpa [#allocation6], 0
    %9 = vsyncpa [#allocation4], 0
    // Predicated region
    $region2: #{tpu_custom_call.1} parent=1 // pred_check
      _
    $region3: #{tpu_custom_call.1} parent=1 // pred_check_branch
      %11 = sbr.rel (0) target = $region5
    $region4: #{tpu_custom_call.1} parent=1 // pred_region
      %s13 = ssub.s32 32, 32
      %14 = vsyncadd [#allocation3], %s13
      %s16 = sshll.u32 [#allocation2], 4
      %s17 = int_to_ptr.vmem [resolvable:$true] %s16
      %19 = dma.hbm_to_vmem [thread:$0]  %s0, 32, %s17, [#allocation3]
    $region5: #{tpu_custom_call.1} parent=1 // pred_fallthru
      _
    // Predicated region
    $region6: #{tpu_custom_call.1} parent=1 // pred_check
      _
    $region7: #{tpu_custom_call.1} parent=1 // pred_check_branch
      %21 = sbr.rel (0) target = $region9
    $region8: #{tpu_custom_call.1} parent=1 // pred_region
      %s23 = ssub.s32 576, 576
      %24 = vsyncadd [#allocation6], %s23
      %s25 = sshll.u32 [#allocation5], 4
      %s26 = int_to_ptr.vmem [resolvable:$true] %s25
      %31 = dma.hbm_to_vmem [thread:$0]  %s1, 576, %s26, [#allocation6], 64, 64, 4
    $region9: #{tpu_custom_call.1} parent=1 // pred_fallthru
      _
    // Predicated region
    $region10: #{tpu_custom_call.1} parent=1 // pred_check
      _
    $region11: #{tpu_custom_call.1} parent=1 // pred_check_branch
      %33 = sbr.rel (0) target = $region13
    $region12: #{tpu_custom_call.1} parent=1 // pred_region
      %34 = dma.done [#allocation3], 32
    $region13: #{tpu_custom_call.1} parent=1 // pred_fallthru
      _
    // Predicated region
    $region14: #{tpu_custom_call.1} parent=1 // pred_check
      _
    $region15: #{tpu_custom_call.1} parent=1 // pred_check_branch
      %36 = sbr.rel (0) target = $region17
    $region16: #{tpu_custom_call.1} parent=1 // pred_region
      %37 = dma.done [#allocation6], 576
    $region17: #{tpu_custom_call.1} parent=1 // pred_fallthru
      _
    %v39 = vlaneseq
    %v40 = vand.u32 %v39, 127
    %v41 = vld [vmem:[#allocation5] sm:$0xf]
    %v42 = vld [vmem:[#allocation5 + $0x4] sm:$0xf]
    %v43 = vld [vmem:[#allocation5 + $0x8] sm:$0xf]
    %s44 = scalar_lea.vmem [#allocation5], 12
    %v45 = vld [vmem:[%s44] sm:$0xf]
    %v46 = vld [vmem:[%s44 + $0x4] sm:$0xf]
    %v47 = vld [vmem:[%s44 + $0x8] sm:$0xf]
    %s48 = scalar_lea.vmem [#allocation5], 24
    %v49 = vld [vmem:[%s48] sm:$0xf]
    %v50 = vld [vmem:[%s48 + $0x4] sm:$0xf]
    %v51 = vld [vmem:[%s48 + $0x8] sm:$0xf]
    %v52 = vld [vmem:[#allocation2] sm:$0x3]
    %53 = vset.pattern.permute.xlu0 0
    %54 = vperm.xlu0 %53, %v52
    %v55 = vpop.permute.xlu0 %54
    %vm56 = vcmp.eq.s32.totalorder %v40, %v55
    %v57 = vsel %vm56, 1, 0
    %v58 = vcvt.s32.f32 %v57
    %v59 = vpack.c.bf16 %v58, %v58
    %v63 = vunpack.c.l.b16 %v45
    %v64 = vunpack.c.l.b16 %v46
    %v65 = vunpack.c.l.b16 %v47
    %v66 = vpack.c.b16 %v64, %v63
    %v67 = vpack.c.b16 %v65, %v65
    %vm69 = vcmask 195584
    %v71 = vsel %vm69, %v59, 0
    %vm73 = vcmask 1043456
    %v75 = vsel %vm73, %v67, 0
    %77 = vmatprep.subr.bf16.mxu0 0
    %78 = vmatpush1.bf16.msra.mxu0 %v66
    %79 = vmatprep.subr.bf16.mxu0 0
    %80 = vmatpush1.bf16.msra.mxu0 %v75
    %81 = vmatprep.subr.bf16.mxu0 0
    %82 = vmatpush1.bf16.msra.mxu0 0
    %83 = vmatprep.subr.bf16.mxu0 0
    %84 = vmatpush1.bf16.msra.mxu0 0
    %85 = vmatprep.subr.bf16.mxu0 0
    %86 = vmatpush1.bf16.msra.mxu0 0
    %87 = vmatprep.subr.bf16.mxu0 0
    %88 = vmatpush1.bf16.msra.mxu0 0
    %89 = vmatprep.subr.bf16.mxu0 0
    %90 = vmatpush1.bf16.msra.mxu0 0
    %91 = vmatprep.subr.bf16.mxu0 0
    %92 = vmatpush1.bf16.msra.mxu0 0
    %93 = vmatprep.subr.bf16.mxu0 0
    %94 = vmatpush1.bf16.msra.mxu0 0
    %95 = vmatprep.subr.bf16.mxu0 0
    %96 = vmatpush1.bf16.msra.mxu0 0
    %97 = vmatprep.subr.bf16.mxu0 0
    %98 = vmatpush1.bf16.msra.mxu0 0
    %99 = vmatprep.subr.bf16.mxu0 0
    %100 = vmatpush1.bf16.msra.mxu0 0
    %101 = vmatprep.subr.bf16.mxu0 0
    %102 = vmatpush1.bf16.msra.mxu0 0
    %103 = vmatprep.subr.bf16.mxu0 0
    %104 = vmatpush1.bf16.msra.mxu0 0
    %105 = vmatprep.subr.bf16.mxu0 0
    %106 = vmatpush1.bf16.msra.mxu0 0
    %107 = vmatprep.subr.bf16.mxu0 0
    %108 = vmatpush1.bf16.msra.mxu0 0
    %109 = vmatprep.mubr.bf16.mxu0 0
    %110 = vmatmul.mubr.bf16.gmra.mrb[0].mxu0 %v71
    %v111 = vpop.f32.mrb[0].mxu0
    %v112 = vadd.f32 0.0, %v111
    %v113 = vpop.f32.mrb[0].mxu0
    %v114 = vpop.f32.mrb[0].mxu0
    %v115 = vpop.f32.mrb[0].mxu0
    %116 = vdwg.mxu0
    %v120 = vunpack.c.l.b16 %v41
    %v121 = vunpack.c.l.b16 %v42
    %v122 = vunpack.c.l.b16 %v43
    %v123 = vpack.c.b16 %v121, %v120
    %v124 = vpack.c.b16 %v122, %v122
    %v127 = vsel %vm73, %v124, 0
    %129 = vmatprep.subr.bf16.mxu0 0
    %130 = vmatpush1.bf16.msra.mxu0 %v123
    %131 = vmatprep.subr.bf16.mxu0 0
    %132 = vmatpush1.bf16.msra.mxu0 %v127
    %133 = vmatprep.subr.bf16.mxu0 0
    %134 = vmatpush1.bf16.msra.mxu0 0
    %135 = vmatprep.subr.bf16.mxu0 0
    %136 = vmatpush1.bf16.msra.mxu0 0
    %137 = vmatprep.subr.bf16.mxu0 0
    %138 = vmatpush1.bf16.msra.mxu0 0
    %139 = vmatprep.subr.bf16.mxu0 0
    %140 = vmatpush1.bf16.msra.mxu0 0
    %141 = vmatprep.subr.bf16.mxu0 0
    %142 = vmatpush1.bf16.msra.mxu0 0
    %143 = vmatprep.subr.bf16.mxu0 0
    %144 = vmatpush1.bf16.msra.mxu0 0
    %145 = vmatprep.subr.bf16.mxu0 0
    %146 = vmatpush1.bf16.msra.mxu0 0
    %147 = vmatprep.subr.bf16.mxu0 0
    %148 = vmatpush1.bf16.msra.mxu0 0
    %149 = vmatprep.subr.bf16.mxu0 0
    %150 = vmatpush1.bf16.msra.mxu0 0
    %151 = vmatprep.subr.bf16.mxu0 0
    %152 = vmatpush1.bf16.msra.mxu0 0
    %153 = vmatprep.subr.bf16.mxu0 0
    %154 = vmatpush1.bf16.msra.mxu0 0
    %155 = vmatprep.subr.bf16.mxu0 0
    %156 = vmatpush1.bf16.msra.mxu0 0
    %157 = vmatprep.subr.bf16.mxu0 0
    %158 = vmatpush1.bf16.msra.mxu0 0
    %159 = vmatprep.subr.bf16.mxu0 0
    %160 = vmatpush1.bf16.msra.mxu0 0
    %161 = vmatprep.mubr.bf16.mxu0 0
    %162 = vmatmul.mubr.bf16.gmra.mrb[0].mxu0 %v71
    %v163 = vpop.f32.mrb[0].mxu0
    %v164 = vadd.f32 %v112, %v163
    %v165 = vpop.f32.mrb[0].mxu0
    %v166 = vpop.f32.mrb[0].mxu0
    %v167 = vpop.f32.mrb[0].mxu0
    %168 = vdwg.mxu0
    %v172 = vunpack.c.l.b16 %v49
    %v173 = vunpack.c.l.b16 %v50
    %v174 = vunpack.c.l.b16 %v51
    %v175 = vpack.c.b16 %v173, %v172
    %v176 = vpack.c.b16 %v174, %v174
    %v179 = vsel %vm73, %v176, 0
    %181 = vmatprep.subr.bf16.mxu0 0
    %182 = vmatpush1.bf16.msra.mxu0 %v175
    %183 = vmatprep.subr.bf16.mxu0 0
    %184 = vmatpush1.bf16.msra.mxu0 %v179
    %185 = vmatprep.subr.bf16.mxu0 0
    %186 = vmatpush1.bf16.msra.mxu0 0
    %187 = vmatprep.subr.bf16.mxu0 0
    %188 = vmatpush1.bf16.msra.mxu0 0
    %189 = vmatprep.subr.bf16.mxu0 0
    %190 = vmatpush1.bf16.msra.mxu0 0
    %191 = vmatprep.subr.bf16.mxu0 0
    %192 = vmatpush1.bf16.msra.mxu0 0
    %193 = vmatprep.subr.bf16.mxu0 0
    %194 = vmatpush1.bf16.msra.mxu0 0
    %195 = vmatprep.subr.bf16.mxu0 0
    %196 = vmatpush1.bf16.msra.mxu0 0
    %197 = vmatprep.subr.bf16.mxu0 0
    %198 = vmatpush1.bf16.msra.mxu0 0
    %199 = vmatprep.subr.bf16.mxu0 0
    %200 = vmatpush1.bf16.msra.mxu0 0
    %201 = vmatprep.subr.bf16.mxu0 0
    %202 = vmatpush1.bf16.msra.mxu0 0
    %203 = vmatprep.subr.bf16.mxu0 0
    %204 = vmatpush1.bf16.msra.mxu0 0
    %205 = vmatprep.subr.bf16.mxu0 0
    %206 = vmatpush1.bf16.msra.mxu0 0
    %207 = vmatprep.subr.bf16.mxu0 0
    %208 = vmatpush1.bf16.msra.mxu0 0
    %209 = vmatprep.subr.bf16.mxu0 0
    %210 = vmatpush1.bf16.msra.mxu0 0
    %211 = vmatprep.subr.bf16.mxu0 0
    %212 = vmatpush1.bf16.msra.mxu0 0
    %213 = vmatprep.mubr.bf16.mxu0 0
    %214 = vmatmul.mubr.bf16.gmra.mrb[0].mxu0 %v71
    %v215 = vpop.f32.mrb[0].mxu0
    %v216 = vadd.f32 0.0, %v215
    %v217 = vpop.f32.mrb[0].mxu0
    %v218 = vpop.f32.mrb[0].mxu0
    %v219 = vpop.f32.mrb[0].mxu0
    %220 = vdwg.mxu0
    %v221 = vadd.f32 %v164, %v216
    %vm222 = vcmask 254976
    %223 = vst.msk [vmem:[#allocation7] sm:$0x3] %vm222, %v221
    %v224 = vld [vmem:[#allocation2] sm:$0x3]
    %225 = vset.pattern.permute.xlu0 1
    %226 = vperm.xlu0 %225, %v224
    %v227 = vpop.permute.xlu0 %226
    %vm228 = vcmp.eq.s32.totalorder %v40, %v227
    %v229 = vsel %vm228, 1, 0
    %v230 = vcvt.s32.f32 %v229
    %v231 = vpack.c.bf16 %v230, %v230
    %v233 = vsel %vm69, %v231, 0
    %235 = vmatprep.subr.bf16.mxu0 0
    %236 = vmatpush1.bf16.msra.mxu0 %v66
    %237 = vmatprep.subr.bf16.mxu0 0
    %238 = vmatpush1.bf16.msra.mxu0 %v75
    %239 = vmatprep.subr.bf16.mxu0 0
    %240 = vmatpush1.bf16.msra.mxu0 0
    %241 = vmatprep.subr.bf16.mxu0 0
    %242 = vmatpush1.bf16.msra.mxu0 0
    %243 = vmatprep.subr.bf16.mxu0 0
    %244 = vmatpush1.bf16.msra.mxu0 0
    %245 = vmatprep.subr.bf16.mxu0 0
    %246 = vmatpush1.bf16.msra.mxu0 0
    %247 = vmatprep.subr.bf16.mxu0 0
    %248 = vmatpush1.bf16.msra.mxu0 0
    %249 = vmatprep.subr.bf16.mxu0 0
    %250 = vmatpush1.bf16.msra.mxu0 0
    %251 = vmatprep.subr.bf16.mxu0 0
    %252 = vmatpush1.bf16.msra.mxu0 0
    %253 = vmatprep.subr.bf16.mxu0 0
    %254 = vmatpush1.bf16.msra.mxu0 0
    %255 = vmatprep.subr.bf16.mxu0 0
    %256 = vmatpush1.bf16.msra.mxu0 0
    %257 = vmatprep.subr.bf16.mxu0 0
    %258 = vmatpush1.bf16.msra.mxu0 0
    %259 = vmatprep.subr.bf16.mxu0 0
    %260 = vmatpush1.bf16.msra.mxu0 0
    %261 = vmatprep.subr.bf16.mxu0 0
    %262 = vmatpush1.bf16.msra.mxu0 0
    %263 = vmatprep.subr.bf16.mxu0 0
    %264 = vmatpush1.bf16.msra.mxu0 0
    %265 = vmatprep.subr.bf16.mxu0 0
    %266 = vmatpush1.bf16.msra.mxu0 0
    %267 = vmatprep.mubr.bf16.mxu0 0
    %268 = vmatmul.mubr.bf16.gmra.mrb[0].mxu0 %v233
    %v269 = vpop.f32.mrb[0].mxu0
    %v270 = vadd.f32 0.0, %v269
    %v271 = vpop.f32.mrb[0].mxu0
    %v272 = vpop.f32.mrb[0].mxu0
    %v273 = vpop.f32.mrb[0].mxu0
    %274 = vdwg.mxu0
    %275 = vmatprep.subr.bf16.mxu0 0
    %276 = vmatpush1.bf16.msra.mxu0 %v123
    %277 = vmatprep.subr.bf16.mxu0 0
    %278 = vmatpush1.bf16.msra.mxu0 %v127
    %279 = vmatprep.subr.bf16.mxu0 0
    %280 = vmatpush1.bf16.msra.mxu0 0
    %281 = vmatprep.subr.bf16.mxu0 0
    %282 = vmatpush1.bf16.msra.mxu0 0
    %283 = vmatprep.subr.bf16.mxu0 0
    %284 = vmatpush1.bf16.msra.mxu0 0
    %285 = vmatprep.subr.bf16.mxu0 0
    %286 = vmatpush1.bf16.msra.mxu0 0
    %287 = vmatprep.subr.bf16.mxu0 0
    %288 = vmatpush1.bf16.msra.mxu0 0
    %289 = vmatprep.subr.bf16.mxu0 0
    %290 = vmatpush1.bf16.msra.mxu0 0
    %291 = vmatprep.subr.bf16.mxu0 0
    %292 = vmatpush1.bf16.msra.mxu0 0
    %293 = vmatprep.subr.bf16.mxu0 0
    %294 = vmatpush1.bf16.msra.mxu0 0
    %295 = vmatprep.subr.bf16.mxu0 0
    %296 = vmatpush1.bf16.msra.mxu0 0
    %297 = vmatprep.subr.bf16.mxu0 0
    %298 = vmatpush1.bf16.msra.mxu0 0
    %299 = vmatprep.subr.bf16.mxu0 0
    %300 = vmatpush1.bf16.msra.mxu0 0
    %301 = vmatprep.subr.bf16.mxu0 0
    %302 = vmatpush1.bf16.msra.mxu0 0
    %303 = vmatprep.subr.bf16.mxu0 0
    %304 = vmatpush1.bf16.msra.mxu0 0
    %305 = vmatprep.subr.bf16.mxu0 0
    %306 = vmatpush1.bf16.msra.mxu0 0
    %307 = vmatprep.mubr.bf16.mxu0 0
    %308 = vmatmul.mubr.bf16.gmra.mrb[0].mxu0 %v233
    %v309 = vpop.f32.mrb[0].mxu0
    %v310 = vadd.f32 %v270, %v309
    %v311 = vpop.f32.mrb[0].mxu0
    %v312 = vpop.f32.mrb[0].mxu0
    %v313 = vpop.f32.mrb[0].mxu0
    %314 = vdwg.mxu0
    %315 = vmatprep.subr.bf16.mxu0 0
    %316 = vmatpush1.bf16.msra.mxu0 %v175
    %317 = vmatprep.subr.bf16.mxu0 0
    %318 = vmatpush1.bf16.msra.mxu0 %v179
    %319 = vmatprep.subr.bf16.mxu0 0
    %320 = vmatpush1.bf16.msra.mxu0 0
    %321 = vmatprep.subr.bf16.mxu0 0
    %322 = vmatpush1.bf16.msra.mxu0 0
    %323 = vmatprep.subr.bf16.mxu0 0
    %324 = vmatpush1.bf16.msra.mxu0 0
    %325 = vmatprep.subr.bf16.mxu0 0
    %326 = vmatpush1.bf16.msra.mxu0 0
    %327 = vmatprep.subr.bf16.mxu0 0
    %328 = vmatpush1.bf16.msra.mxu0 0
    %329 = vmatprep.subr.bf16.mxu0 0
    %330 = vmatpush1.bf16.msra.mxu0 0
    %331 = vmatprep.subr.bf16.mxu0 0
    %332 = vmatpush1.bf16.msra.mxu0 0
    %333 = vmatprep.subr.bf16.mxu0 0
    %334 = vmatpush1.bf16.msra.mxu0 0
    %335 = vmatprep.subr.bf16.mxu0 0
    %336 = vmatpush1.bf16.msra.mxu0 0
    %337 = vmatprep.subr.bf16.mxu0 0
    %338 = vmatpush1.bf16.msra.mxu0 0
    %339 = vmatprep.subr.bf16.mxu0 0
    %340 = vmatpush1.bf16.msra.mxu0 0
    %341 = vmatprep.subr.bf16.mxu0 0
    %342 = vmatpush1.bf16.msra.mxu0 0
    %343 = vmatprep.subr.bf16.mxu0 0
    %344 = vmatpush1.bf16.msra.mxu0 0
    %345 = vmatprep.subr.bf16.mxu0 0
    %346 = vmatpush1.bf16.msra.mxu0 0
    %347 = vmatprep.mubr.bf16.mxu0 0
    %348 = vmatmul.mubr.bf16.gmra.mrb[0].mxu0 %v233
    %v349 = vpop.f32.mrb[0].mxu0
    %v350 = vadd.f32 0.0, %v349
    %v351 = vpop.f32.mrb[0].mxu0
    %v352 = vpop.f32.mrb[0].mxu0
    %v353 = vpop.f32.mrb[0].mxu0
    %354 = vdwg.mxu0
    %v355 = vadd.f32 %v310, %v350
    %357 = vrot.lane.b32.xlu0 %v355, 32
    %v358 = vpop.permute.xlu0 %357
    %vm360 = vcmask 517376
    %361 = vst.msk [vmem:[#allocation7] sm:$0x3] %vm360, %v358
    %v362 = vld [vmem:[#allocation2] sm:$0x3]
    %363 = vset.pattern.permute.xlu0 2
    %364 = vperm.xlu0 %363, %v362
    %v365 = vpop.permute.xlu0 %364
    %vm366 = vcmp.eq.s32.totalorder %v40, %v365
    %v367 = vsel %vm366, 1, 0
    %v368 = vcvt.s32.f32 %v367
    %v369 = vpack.c.bf16 %v368, %v368
    %v371 = vsel %vm69, %v369, 0
    %373 = vmatprep.subr.bf16.mxu0 0
    %374 = vmatpush1.bf16.msra.mxu0 %v66
    %375 = vmatprep.subr.bf16.mxu0 0
    %376 = vmatpush1.bf16.msra.mxu0 %v75
    %377 = vmatprep.subr.bf16.mxu0 0
    %378 = vmatpush1.bf16.msra.mxu0 0
    %379 = vmatprep.subr.bf16.mxu0 0
    %380 = vmatpush1.bf16.msra.mxu0 0
    %381 = vmatprep.subr.bf16.mxu0 0
    %382 = vmatpush1.bf16.msra.mxu0 0
    %383 = vmatprep.subr.bf16.mxu0 0
    %384 = vmatpush1.bf16.msra.mxu0 0
    %385 = vmatprep.subr.bf16.mxu0 0
    %386 = vmatpush1.bf16.msra.mxu0 0
    %387 = vmatprep.subr.bf16.mxu0 0
    %388 = vmatpush1.bf16.msra.mxu0 0
    %389 = vmatprep.subr.bf16.mxu0 0
    %390 = vmatpush1.bf16.msra.mxu0 0
    %391 = vmatprep.subr.bf16.mxu0 0
    %392 = vmatpush1.bf16.msra.mxu0 0
    %393 = vmatprep.subr.bf16.mxu0 0
    %394 = vmatpush1.bf16.msra.mxu0 0
    %395 = vmatprep.subr.bf16.mxu0 0
    %396 = vmatpush1.bf16.msra.mxu0 0
    %397 = vmatprep.subr.bf16.mxu0 0
    %398 = vmatpush1.bf16.msra.mxu0 0
    %399 = vmatprep.subr.bf16.mxu0 0
    %400 = vmatpush1.bf16.msra.mxu0 0
    %401 = vmatprep.subr.bf16.mxu0 0
    %402 = vmatpush1.bf16.msra.mxu0 0
    %403 = vmatprep.subr.bf16.mxu0 0
    %404 = vmatpush1.bf16.msra.mxu0 0
    %405 = vmatprep.mubr.bf16.mxu0 0
    %406 = vmatmul.mubr.bf16.gmra.mrb[0].mxu0 %v371
    %v407 = vpop.f32.mrb[0].mxu0
    %v408 = vadd.f32 0.0, %v407
    %v409 = vpop.f32.mrb[0].mxu0
    %v410 = vpop.f32.mrb[0].mxu0
    %v411 = vpop.f32.mrb[0].mxu0
    %412 = vdwg.mxu0
    %413 = vmatprep.subr.bf16.mxu0 0
    %414 = vmatpush1.bf16.msra.mxu0 %v123
    %415 = vmatprep.subr.bf16.mxu0 0
    %416 = vmatpush1.bf16.msra.mxu0 %v127
    %417 = vmatprep.subr.bf16.mxu0 0
    %418 = vmatpush1.bf16.msra.mxu0 0
    %419 = vmatprep.subr.bf16.mxu0 0
    %420 = vmatpush1.bf16.msra.mxu0 0
    %421 = vmatprep.subr.bf16.mxu0 0
    %422 = vmatpush1.bf16.msra.mxu0 0
    %423 = vmatprep.subr.bf16.mxu0 0
    %424 = vmatpush1.bf16.msra.mxu0 0
    %425 = vmatprep.subr.bf16.mxu0 0
    %426 = vmatpush1.bf16.msra.mxu0 0
    %427 = vmatprep.subr.bf16.mxu0 0
    %428 = vmatpush1.bf16.msra.mxu0 0
    %429 = vmatprep.subr.bf16.mxu0 0
    %430 = vmatpush1.bf16.msra.mxu0 0
    %431 = vmatprep.subr.bf16.mxu0 0
    %432 = vmatpush1.bf16.msra.mxu0 0
    %433 = vmatprep.subr.bf16.mxu0 0
    %434 = vmatpush1.bf16.msra.mxu0 0
    %435 = vmatprep.subr.bf16.mxu0 0
    %436 = vmatpush1.bf16.msra.mxu0 0
    %437 = vmatprep.subr.bf16.mxu0 0
    %438 = vmatpush1.bf16.msra.mxu0 0
    %439 = vmatprep.subr.bf16.mxu0 0
    %440 = vmatpush1.bf16.msra.mxu0 0
    %441 = vmatprep.subr.bf16.mxu0 0
    %442 = vmatpush1.bf16.msra.mxu0 0
    %443 = vmatprep.subr.bf16.mxu0 0
    %444 = vmatpush1.bf16.msra.mxu0 0
    %445 = vmatprep.mubr.bf16.mxu0 0
    %446 = vmatmul.mubr.bf16.gmra.mrb[0].mxu0 %v371
    %v447 = vpop.f32.mrb[0].mxu0
    %v448 = vadd.f32 %v408, %v447
    %v449 = vpop.f32.mrb[0].mxu0
    %v450 = vpop.f32.mrb[0].mxu0
    %v451 = vpop.f32.mrb[0].mxu0
    %452 = vdwg.mxu0
    %453 = vmatprep.subr.bf16.mxu0 0
    %454 = vmatpush1.bf16.msra.mxu0 %v175
    %455 = vmatprep.subr.bf16.mxu0 0
    %456 = vmatpush1.bf16.msra.mxu0 %v179
    %457 = vmatprep.subr.bf16.mxu0 0
    %458 = vmatpush1.bf16.msra.mxu0 0
    %459 = vmatprep.subr.bf16.mxu0 0
    %460 = vmatpush1.bf16.msra.mxu0 0
    %461 = vmatprep.subr.bf16.mxu0 0
    %462 = vmatpush1.bf16.msra.mxu0 0
    %463 = vmatprep.subr.bf16.mxu0 0
    %464 = vmatpush1.bf16.msra.mxu0 0
    %465 = vmatprep.subr.bf16.mxu0 0
    %466 = vmatpush1.bf16.msra.mxu0 0
    %467 = vmatprep.subr.bf16.mxu0 0
    %468 = vmatpush1.bf16.msra.mxu0 0
    %469 = vmatprep.subr.bf16.mxu0 0
    %470 = vmatpush1.bf16.msra.mxu0 0
    %471 = vmatprep.subr.bf16.mxu0 0
    %472 = vmatpush1.bf16.msra.mxu0 0
    %473 = vmatprep.subr.bf16.mxu0 0
    %474 = vmatpush1.bf16.msra.mxu0 0
    %475 = vmatprep.subr.bf16.mxu0 0
    %476 = vmatpush1.bf16.msra.mxu0 0
    %477 = vmatprep.subr.bf16.mxu0 0
    %478 = vmatpush1.bf16.msra.mxu0 0
    %479 = vmatprep.subr.bf16.mxu0 0
    %480 = vmatpush1.bf16.msra.mxu0 0
    %481 = vmatprep.subr.bf16.mxu0 0
    %482 = vmatpush1.bf16.msra.mxu0 0
    %483 = vmatprep.subr.bf16.mxu0 0
    %484 = vmatpush1.bf16.msra.mxu0 0
    %485 = vmatprep.mubr.bf16.mxu0 0
    %486 = vmatmul.mubr.bf16.gmra.mrb[0].mxu0 %v371
    %v487 = vpop.f32.mrb[0].mxu0
    %v488 = vadd.f32 0.0, %v487
    %v489 = vpop.f32.mrb[0].mxu0
    %v490 = vpop.f32.mrb[0].mxu0
    %v491 = vpop.f32.mrb[0].mxu0
    %492 = vdwg.mxu0
    %v493 = vadd.f32 %v448, %v488
    %495 = vrot.lane.b32.xlu0 %v493, 64
    %v496 = vpop.permute.xlu0 %495
    %vm498 = vcmask 779776
    %499 = vst.msk [vmem:[#allocation7] sm:$0x3] %vm498, %v496
    %v500 = vld [vmem:[#allocation2] sm:$0x3]
    %501 = vset.pattern.permute.xlu0 3
    %502 = vperm.xlu0 %501, %v500
    %v503 = vpop.permute.xlu0 %502
    %vm504 = vcmp.eq.s32.totalorder %v40, %v503
    %v505 = vsel %vm504, 1, 0
    %v506 = vcvt.s32.f32 %v505
    %v507 = vpack.c.bf16 %v506, %v506
    %v509 = vsel %vm69, %v507, 0
    %511 = vmatprep.subr.bf16.mxu0 0
    %512 = vmatpush1.bf16.msra.mxu0 %v66
    %513 = vmatprep.subr.bf16.mxu0 0
    %514 = vmatpush1.bf16.msra.mxu0 %v75
    %515 = vmatprep.subr.bf16.mxu0 0
    %516 = vmatpush1.bf16.msra.mxu0 0
    %517 = vmatprep.subr.bf16.mxu0 0
    %518 = vmatpush1.bf16.msra.mxu0 0
    %519 = vmatprep.subr.bf16.mxu0 0
    %520 = vmatpush1.bf16.msra.mxu0 0
    %521 = vmatprep.subr.bf16.mxu0 0
    %522 = vmatpush1.bf16.msra.mxu0 0
    %523 = vmatprep.subr.bf16.mxu0 0
    %524 = vmatpush1.bf16.msra.mxu0 0
    %525 = vmatprep.subr.bf16.mxu0 0
    %526 = vmatpush1.bf16.msra.mxu0 0
    %527 = vmatprep.subr.bf16.mxu0 0
    %528 = vmatpush1.bf16.msra.mxu0 0
    %529 = vmatprep.subr.bf16.mxu0 0
    %530 = vmatpush1.bf16.msra.mxu0 0
    %531 = vmatprep.subr.bf16.mxu0 0
    %532 = vmatpush1.bf16.msra.mxu0 0
    %533 = vmatprep.subr.bf16.mxu0 0
    %534 = vmatpush1.bf16.msra.mxu0 0
    %535 = vmatprep.subr.bf16.mxu0 0
    %536 = vmatpush1.bf16.msra.mxu0 0
    %537 = vmatprep.subr.bf16.mxu0 0
    %538 = vmatpush1.bf16.msra.mxu0 0
    %539 = vmatprep.subr.bf16.mxu0 0
    %540 = vmatpush1.bf16.msra.mxu0 0
    %541 = vmatprep.subr.bf16.mxu0 0
    %542 = vmatpush1.bf16.msra.mxu0 0
    %543 = vmatprep.mubr.bf16.mxu0 0
    %544 = vmatmul.mubr.bf16.gmra.mrb[0].mxu0 %v509
    %v545 = vpop.f32.mrb[0].mxu0
    %v546 = vadd.f32 0.0, %v545
    %v547 = vpop.f32.mrb[0].mxu0
    %v548 = vpop.f32.mrb[0].mxu0
    %v549 = vpop.f32.mrb[0].mxu0
    %550 = vdwg.mxu0
    %551 = vmatprep.subr.bf16.mxu0 0
    %552 = vmatpush1.bf16.msra.mxu0 %v123
    %553 = vmatprep.subr.bf16.mxu0 0
    %554 = vmatpush1.bf16.msra.mxu0 %v127
    %555 = vmatprep.subr.bf16.mxu0 0
    %556 = vmatpush1.bf16.msra.mxu0 0
    %557 = vmatprep.subr.bf16.mxu0 0
    %558 = vmatpush1.bf16.msra.mxu0 0
    %559 = vmatprep.subr.bf16.mxu0 0
    %560 = vmatpush1.bf16.msra.mxu0 0
    %561 = vmatprep.subr.bf16.mxu0 0
    %562 = vmatpush1.bf16.msra.mxu0 0
    %563 = vmatprep.subr.bf16.mxu0 0
    %564 = vmatpush1.bf16.msra.mxu0 0
    %565 = vmatprep.subr.bf16.mxu0 0
    %566 = vmatpush1.bf16.msra.mxu0 0
    %567 = vmatprep.subr.bf16.mxu0 0
    %568 = vmatpush1.bf16.msra.mxu0 0
    %569 = vmatprep.subr.bf16.mxu0 0
    %570 = vmatpush1.bf16.msra.mxu0 0
    %571 = vmatprep.subr.bf16.mxu0 0
    %572 = vmatpush1.bf16.msra.mxu0 0
    %573 = vmatprep.subr.bf16.mxu0 0
    %574 = vmatpush1.bf16.msra.mxu0 0
    %575 = vmatprep.subr.bf16.mxu0 0
    %576 = vmatpush1.bf16.msra.mxu0 0
    %577 = vmatprep.subr.bf16.mxu0 0
    %578 = vmatpush1.bf16.msra.mxu0 0
    %579 = vmatprep.subr.bf16.mxu0 0
    %580 = vmatpush1.bf16.msra.mxu0 0
    %581 = vmatprep.subr.bf16.mxu0 0
    %582 = vmatpush1.bf16.msra.mxu0 0
    %583 = vmatprep.mubr.bf16.mxu0 0
    %584 = vmatmul.mubr.bf16.gmra.mrb[0].mxu0 %v509
    %v585 = vpop.f32.mrb[0].mxu0
    %v586 = vadd.f32 %v546, %v585
    %v587 = vpop.f32.mrb[0].mxu0
    %v588 = vpop.f32.mrb[0].mxu0
    %v589 = vpop.f32.mrb[0].mxu0
    %590 = vdwg.mxu0
    %591 = vmatprep.subr.bf16.mxu0 0
    %592 = vmatpush1.bf16.msra.mxu0 %v175
    %593 = vmatprep.subr.bf16.mxu0 0
    %594 = vmatpush1.bf16.msra.mxu0 %v179
    %595 = vmatprep.subr.bf16.mxu0 0
    %596 = vmatpush1.bf16.msra.mxu0 0
    %597 = vmatprep.subr.bf16.mxu0 0
    %598 = vmatpush1.bf16.msra.mxu0 0
    %599 = vmatprep.subr.bf16.mxu0 0
    %600 = vmatpush1.bf16.msra.mxu0 0
    %601 = vmatprep.subr.bf16.mxu0 0
    %602 = vmatpush1.bf16.msra.mxu0 0
    %603 = vmatprep.subr.bf16.mxu0 0
    %604 = vmatpush1.bf16.msra.mxu0 0
    %605 = vmatprep.subr.bf16.mxu0 0
    %606 = vmatpush1.bf16.msra.mxu0 0
    %607 = vmatprep.subr.bf16.mxu0 0
    %608 = vmatpush1.bf16.msra.mxu0 0
    %609 = vmatprep.subr.bf16.mxu0 0
    %610 = vmatpush1.bf16.msra.mxu0 0
    %611 = vmatprep.subr.bf16.mxu0 0
    %612 = vmatpush1.bf16.msra.mxu0 0
    %613 = vmatprep.subr.bf16.mxu0 0
    %614 = vmatpush1.bf16.msra.mxu0 0
    %615 = vmatprep.subr.bf16.mxu0 0
    %616 = vmatpush1.bf16.msra.mxu0 0
    %617 = vmatprep.subr.bf16.mxu0 0
    %618 = vmatpush1.bf16.msra.mxu0 0
    %619 = vmatprep.subr.bf16.mxu0 0
    %620 = vmatpush1.bf16.msra.mxu0 0
    %621 = vmatprep.subr.bf16.mxu0 0
    %622 = vmatpush1.bf16.msra.mxu0 0
    %623 = vmatprep.mubr.bf16.mxu0 0
    %624 = vmatmul.mubr.bf16.gmra.mrb[0].mxu0 %v509
    %v625 = vpop.f32.mrb[0].mxu0
    %v626 = vadd.f32 0.0, %v625
    %v627 = vpop.f32.mrb[0].mxu0
    %v628 = vpop.f32.mrb[0].mxu0
    %v629 = vpop.f32.mrb[0].mxu0
    %630 = vdwg.mxu0
    %v631 = vadd.f32 %v586, %v626
    %633 = vrot.lane.b32.xlu0 %v631, 96
    %v634 = vpop.permute.xlu0 %633
    %vm636 = vcmask 1042176
    %637 = vst.msk [vmem:[#allocation7] sm:$0x3] %vm636, %v634
    // Predicated region
    $region18: #{tpu_custom_call.1} parent=1 // pred_check
      _
    $region19: #{tpu_custom_call.1} parent=1 // pred_check_branch
      %639 = sbr.rel (0) target = $region21
    $region20: #{tpu_custom_call.1} parent=1 // pred_region
      %s641 = ssub.s32 32, 32
      %642 = vsyncadd [#allocation4], %s641
      %s644 = sshll.u32 [#allocation7], 4
      %s645 = int_to_ptr.vmem [resolvable:$true] %s644
      %647 = dma.vmem_to_hbm [thread:$0]  %s645, 32, %s2, [#allocation4]
    $region21: #{tpu_custom_call.1} parent=1 // pred_fallthru
      _
    // Predicated region
    $region22: #{tpu_custom_call.1} parent=1 // pred_check
      _
    $region23: #{tpu_custom_call.1} parent=1 // pred_check_branch
      %649 = sbr.rel (0) target = $region25
    $region24: #{tpu_custom_call.1} parent=1 // pred_region
      %650 = dma.done [#allocation4], 32
    $region25: #{tpu_custom_call.1} parent=1 // pred_fallthru
      _
    %651 = vsyncpa [#allocation3], 1
    %652 = vsyncpa [#allocation6], 1
    %653 = vsyncpa [#allocation4], 1

// kernel: tpu_custom_call.1
$region0: #{tpu_custom_call.1}
  #allocation0 [shape = 'u32[]', space=smem, size = 0x4, offset = 0x4, fixed_abs, tag = 'smem constant byte address 0x4 - core index']
  #allocation1 [shape = 'u32[144,128]{1,0:T(1,128)}', space=vmem, size = 0x12000, scoped, tag = 'internal scratch']
  %s0 = inlined_call_operand.hbm [shape: s32[2,4], index: 0, kind: input, shape index: {}]
  %s1 = inlined_call_operand.hbm [shape: bf16[3,24,32], index: 1, kind: input, shape index: {}]
  %s2 = inlined_call_operand.hbm [shape: f32[2,128], index: 2, kind: output, shape index: {}]
  %s3 = sld [smem:[#allocation0]]
  $region26: #{tpu_custom_call.1} parent=0
    _
  %s5 = ssub.s32 1, %s3
  %s6 = scalar_select 0, %s5, %s3
  $region1: #{tpu_custom_call.1} parent=0
    #allocation2 [shape = 'u8[1024]{0}', space=vmem, size = 0x400, scoped, tag = 'input window, operand 0, single buffered']
    #allocation3 [shape = 's32[1]{0}', space=sflag, size = 0x4, scoped, tag = 'scoped memory for tpu_custom_call.1']
    #allocation4 [shape = 's32[1]{0}', space=sflag, size = 0x4, scoped, tag = 'scoped memory for tpu_custom_call.1']
    #allocation5 [shape = 'u8[18432]{0}', space=vmem, size = 0x4800, scoped, tag = 'input window, operand 1, single buffered']
    #allocation6 [shape = 's32[1]{0}', space=sflag, size = 0x4, scoped, tag = 'scoped memory for tpu_custom_call.1']
    #allocation7 [shape = 'u8[1024]{0}', space=vmem, size = 0x400, scoped, tag = 'output window, operand 0, single buffered']
    %7 = vsyncpa [#allocation3], 0
    %8 = vsyncpa [#allocation6], 0
    %9 = vsyncpa [#allocation4], 0
    // Predicated region
    $region2: #{tpu_custom_call.1} parent=1 // pred_check
      _
    $region3: #{tpu_custom_call.1} parent=1 // pred_check_branch
      %11 = sbr.rel (0) target = $region5
    $region4: #{tpu_custom_call.1} parent=1 // pred_region
      %s13 = ssub.s32 32, 32
      %14 = vsyncadd [#allocation3], %s13
      %s16 = sshll.u32 [#allocation2], 4
      %s17 = int_to_ptr.vmem [resolvable:$true] %s16
      %19 = dma.hbm_to_vmem [thread:$0]  %s0, 32, %s17, [#allocation3]
    $region5: #{tpu_custom_call.1} parent=1 // pred_fallthru
      _
    // Predicated region
    $region6: #{tpu_custom_call.1} parent=1 // pred_check
      _
    $region7: #{tpu_custom_call.1} parent=1 // pred_check_branch
      %21 = sbr.rel (0) target = $region9
    $region8: #{tpu_custom_call.1} parent=1 // pred_region
      %s23 = ssub.s32 576, 576
      %24 = vsyncadd [#allocation6], %s23
      %s25 = sshll.u32 [#allocation5], 4
      %s26 = int_to_ptr.vmem [resolvable:$true] %s25
      %31 = dma.hbm_to_vmem [thread:$0]  %s1, 576, %s26, [#allocation6], 64, 64, 4
    $region9: #{tpu_custom_call.1} parent=1 // pred_fallthru
      _
    // Predicated region
    $region10: #{tpu_custom_call.1} parent=1 // pred_check
      _
    $region11: #{tpu_custom_call.1} parent=1 // pred_check_branch
      %33 = sbr.rel (0) target = $region13
    $region12: #{tpu_custom_call.1} parent=1 // pred_region
      %34 = dma.done [#allocation3], 32
    $region13: #{tpu_custom_call.1} parent=1 // pred_fallthru
      _
    // Predicated region
    $region14: #{tpu_custom_call.1} parent=1 // pred_check
      _
    $region15: #{tpu_custom_call.1} parent=1 // pred_check_branch
      %36 = sbr.rel (0) target = $region17
    $region16: #{tpu_custom_call.1} parent=1 // pred_region
      %37 = dma.done [#allocation6], 576
    $region17: #{tpu_custom_call.1} parent=1 // pred_fallthru
      _
    %v39 = vlaneseq
    %v40 = vand.u32 %v39, 127
    %v41 = vld [vmem:[#allocation5] sm:$0xf]
    %v42 = vld [vmem:[#allocation5 + $0x4] sm:$0xf]
    %v43 = vld [vmem:[#allocation5 + $0x8] sm:$0xf]
    %s44 = scalar_lea.vmem [#allocation5], 12
    %v45 = vld [vmem:[%s44] sm:$0xf]
    %v46 = vld [vmem:[%s44 + $0x4] sm:$0xf]
    %v47 = vld [vmem:[%s44 + $0x8] sm:$0xf]
    %s48 = scalar_lea.vmem [#allocation5], 24
    %v49 = vld [vmem:[%s48] sm:$0xf]
    %v50 = vld [vmem:[%s48 + $0x4] sm:$0xf]
    %v51 = vld [vmem:[%s48 + $0x8] sm:$0xf]
    %v52 = vld [vmem:[#allocation2] sm:$0x3]
    %53 = vset.pattern.permute.xlu0 0
    %54 = vperm.xlu0 %53, %v52
    %v55 = vpop.permute.xlu0 %54
    %vm56 = vcmp.eq.s32.totalorder %v40, %v55
    %v57 = vsel %vm56, 1, 0
    %v58 = vcvt.s32.f32 %v57
    %v59 = vpack.c.bf16 %v58, %v58
    %v63 = vunpack.c.l.b16 %v45
    %v64 = vunpack.c.l.b16 %v46
    %v65 = vunpack.c.l.b16 %v47
    %v66 = vpack.c.b16 %v64, %v63
    %v67 = vpack.c.b16 %v65, %v65
    %vm69 = vcmask 195584
    %v71 = vsel %vm69, %v59, 0
    %vm73 = vcmask 1043456
    %v75 = vsel %vm73, %v67, 0
    %77 = vmatprep.subr.bf16.mxu0 0
    %78 = vmatpush1.bf16.msra.mxu0 %v66
    %79 = vmatprep.subr.bf16.mxu0 0
    %80 = vmatpush1.bf16.msra.mxu0 %v75
    %81 = vmatprep.subr.bf16.mxu0 0
    %82 = vmatpush1.bf16.msra.mxu0 0
    %83 = vmatprep.subr.bf16.mxu0 0
    %84 = vmatpush1.bf16.msra.mxu0 0
    %85 = vmatprep.subr.bf16.mxu0 0
    %86 = vmatpush1.bf16.msra.mxu0 0
    %87 = vmatprep.subr.bf16.mxu0 0
    %88 = vmatpush1.bf16.msra.mxu0 0
    %89 = vmatprep.subr.bf16.mxu0 0
    %90 = vmatpush1.bf16.msra.mxu0 0
    %91 = vmatprep.subr.bf16.mxu0 0
    %92 = vmatpush1.bf16.msra.mxu0 0
    %93 = vmatprep.subr.bf16.mxu0 0
    %94 = vmatpush1.bf16.msra.mxu0 0
    %95 = vmatprep.subr.bf16.mxu0 0
    %96 = vmatpush1.bf16.msra.mxu0 0
    %97 = vmatprep.subr.bf16.mxu0 0
    %98 = vmatpush1.bf16.msra.mxu0 0
    %99 = vmatprep.subr.bf16.mxu0 0
    %100 = vmatpush1.bf16.msra.mxu0 0
    %101 = vmatprep.subr.bf16.mxu0 0
    %102 = vmatpush1.bf16.msra.mxu0 0
    %103 = vmatprep.subr.bf16.mxu0 0
    %104 = vmatpush1.bf16.msra.mxu0 0
    %105 = vmatprep.subr.bf16.mxu0 0
    %106 = vmatpush1.bf16.msra.mxu0 0
    %107 = vmatprep.subr.bf16.mxu0 0
    %108 = vmatpush1.bf16.msra.mxu0 0
    %109 = vmatprep.mubr.bf16.mxu0 0
    %110 = vmatmul.mubr.bf16.gmra.mrb[0].mxu0 %v71
    %v111 = vpop.f32.mrb[0].mxu0
    %v112 = vadd.f32 0.0, %v111
    %v113 = vpop.f32.mrb[0].mxu0
    %v114 = vpop.f32.mrb[0].mxu0
    %v115 = vpop.f32.mrb[0].mxu0
    %116 = vdwg.mxu0
    %v120 = vunpack.c.l.b16 %v41
    %v121 = vunpack.c.l.b16 %v42
    %v122 = vunpack.c.l.b16 %v43
    %v123 = vpack.c.b16 %v121, %v120
    %v124 = vpack.c.b16 %v122, %v122
    %v127 = vsel %vm73, %v124, 0
    %129 = vmatprep.subr.bf16.mxu0 0
    %130 = vmatpush1.bf16.msra.mxu0 %v123
    %131 = vmatprep.subr.bf16.mxu0 0
    %132 = vmatpush1.bf16.msra.mxu0 %v127
    %133 = vmatprep.subr.bf16.mxu0 0
    %134 = vmatpush1.bf16.msra.mxu0 0
    %135 = vmatprep.subr.bf16.mxu0 0
    %136 = vmatpush1.bf16.msra.mxu0 0
    %137 = vmatprep.subr.bf16.mxu0 0
    %138 = vmatpush1.bf16.msra.mxu0 0
    %139 = vmatprep.subr.bf16.mxu0 0
    %140 = vmatpush1.bf16.msra.mxu0 0
    %141 = vmatprep.subr.bf16.mxu0 0
    %142 = vmatpush1.bf16.msra.mxu0 0
    %143 = vmatprep.subr.bf16.mxu0 0
    %144 = vmatpush1.bf16.msra.mxu0 0
    %145 = vmatprep.subr.bf16.mxu0 0
    %146 = vmatpush1.bf16.msra.mxu0 0
    %147 = vmatprep.subr.bf16.mxu0 0
    %148 = vmatpush1.bf16.msra.mxu0 0
    %149 = vmatprep.subr.bf16.mxu0 0
    %150 = vmatpush1.bf16.msra.mxu0 0
    %151 = vmatprep.subr.bf16.mxu0 0
    %152 = vmatpush1.bf16.msra.mxu0 0
    %153 = vmatprep.subr.bf16.mxu0 0
    %154 = vmatpush1.bf16.msra.mxu0 0
    %155 = vmatprep.subr.bf16.mxu0 0
    %156 = vmatpush1.bf16.msra.mxu0 0
    %157 = vmatprep.subr.bf16.mxu0 0
    %158 = vmatpush1.bf16.msra.mxu0 0
    %159 = vmatprep.subr.bf16.mxu0 0
    %160 = vmatpush1.bf16.msra.mxu0 0
    %161 = vmatprep.mubr.bf16.mxu0 0
    %162 = vmatmul.mubr.bf16.gmra.mrb[0].mxu0 %v71
    %v163 = vpop.f32.mrb[0].mxu0
    %v164 = vadd.f32 %v112, %v163
    %v165 = vpop.f32.mrb[0].mxu0
    %v166 = vpop.f32.mrb[0].mxu0
    %v167 = vpop.f32.mrb[0].mxu0
    %168 = vdwg.mxu0
    %v172 = vunpack.c.l.b16 %v49
    %v173 = vunpack.c.l.b16 %v50
    %v174 = vunpack.c.l.b16 %v51
    %v175 = vpack.c.b16 %v173, %v172
    %v176 = vpack.c.b16 %v174, %v174
    %v179 = vsel %vm73, %v176, 0
    %181 = vmatprep.subr.bf16.mxu0 0
    %182 = vmatpush1.bf16.msra.mxu0 %v175
    %183 = vmatprep.subr.bf16.mxu0 0
    %184 = vmatpush1.bf16.msra.mxu0 %v179
    %185 = vmatprep.subr.bf16.mxu0 0
    %186 = vmatpush1.bf16.msra.mxu0 0
    %187 = vmatprep.subr.bf16.mxu0 0
    %188 = vmatpush1.bf16.msra.mxu0 0
    %189 = vmatprep.subr.bf16.mxu0 0
    %190 = vmatpush1.bf16.msra.mxu0 0
    %191 = vmatprep.subr.bf16.mxu0 0
    %192 = vmatpush1.bf16.msra.mxu0 0
    %193 = vmatprep.subr.bf16.mxu0 0
    %194 = vmatpush1.bf16.msra.mxu0 0
    %195 = vmatprep.subr.bf16.mxu0 0
    %196 = vmatpush1.bf16.msra.mxu0 0
    %197 = vmatprep.subr.bf16.mxu0 0
    %198 = vmatpush1.bf16.msra.mxu0 0
    %199 = vmatprep.subr.bf16.mxu0 0
    %200 = vmatpush1.bf16.msra.mxu0 0
    %201 = vmatprep.subr.bf16.mxu0 0
    %202 = vmatpush1.bf16.msra.mxu0 0
    %203 = vmatprep.subr.bf16.mxu0 0
    %204 = vmatpush1.bf16.msra.mxu0 0
    %205 = vmatprep.subr.bf16.mxu0 0
    %206 = vmatpush1.bf16.msra.mxu0 0
    %207 = vmatprep.subr.bf16.mxu0 0
    %208 = vmatpush1.bf16.msra.mxu0 0
    %209 = vmatprep.subr.bf16.mxu0 0
    %210 = vmatpush1.bf16.msra.mxu0 0
    %211 = vmatprep.subr.bf16.mxu0 0
    %212 = vmatpush1.bf16.msra.mxu0 0
    %213 = vmatprep.mubr.bf16.mxu0 0
    %214 = vmatmul.mubr.bf16.gmra.mrb[0].mxu0 %v71
    %v215 = vpop.f32.mrb[0].mxu0
    %v216 = vadd.f32 0.0, %v215
    %v217 = vpop.f32.mrb[0].mxu0
    %v218 = vpop.f32.mrb[0].mxu0
    %v219 = vpop.f32.mrb[0].mxu0
    %220 = vdwg.mxu0
    %v221 = vadd.f32 %v164, %v216
    %vm222 = vcmask 254976
    %223 = vst.msk [vmem:[#allocation7] sm:$0x3] %vm222, %v221
    %v224 = vld [vmem:[#allocation2] sm:$0x3]
    %225 = vset.pattern.permute.xlu0 1
    %226 = vperm.xlu0 %225, %v224
    %v227 = vpop.permute.xlu0 %226
    %vm228 = vcmp.eq.s32.totalorder %v40, %v227
    %v229 = vsel %vm228, 1, 0
    %v230 = vcvt.s32.f32 %v229
    %v231 = vpack.c.bf16 %v230, %v230
    %v233 = vsel %vm69, %v231, 0
    %235 = vmatprep.subr.bf16.mxu0 0
    %236 = vmatpush1.bf16.msra.mxu0 %v66
    %237 = vmatprep.subr.bf16.mxu0 0
    %238 = vmatpush1.bf16.msra.mxu0 %v75
    %239 = vmatprep.subr.bf16.mxu0 0
    %240 = vmatpush1.bf16.msra.mxu0 0
    %241 = vmatprep.subr.bf16.mxu0 0
    %242 = vmatpush1.bf16.msra.mxu0 0
    %243 = vmatprep.subr.bf16.mxu0 0
    %244 = vmatpush1.bf16.msra.mxu0 0
    %245 = vmatprep.subr.bf16.mxu0 0
    %246 = vmatpush1.bf16.msra.mxu0 0
    %247 = vmatprep.subr.bf16.mxu0 0
    %248 = vmatpush1.bf16.msra.mxu0 0
    %249 = vmatprep.subr.bf16.mxu0 0
    %250 = vmatpush1.bf16.msra.mxu0 0
    %251 = vmatprep.subr.bf16.mxu0 0
    %252 = vmatpush1.bf16.msra.mxu0 0
    %253 = vmatprep.subr.bf16.mxu0 0
    %254 = vmatpush1.bf16.msra.mxu0 0
    %255 = vmatprep.subr.bf16.mxu0 0
    %256 = vmatpush1.bf16.msra.mxu0 0
    %257 = vmatprep.subr.bf16.mxu0 0
    %258 = vmatpush1.bf16.msra.mxu0 0
    %259 = vmatprep.subr.bf16.mxu0 0
    %260 = vmatpush1.bf16.msra.mxu0 0
    %261 = vmatprep.subr.bf16.mxu0 0
    %262 = vmatpush1.bf16.msra.mxu0 0
    %263 = vmatprep.subr.bf16.mxu0 0
    %264 = vmatpush1.bf16.msra.mxu0 0
    %265 = vmatprep.subr.bf16.mxu0 0
    %266 = vmatpush1.bf16.msra.mxu0 0
    %267 = vmatprep.mubr.bf16.mxu0 0
    %268 = vmatmul.mubr.bf16.gmra.mrb[0].mxu0 %v233
    %v269 = vpop.f32.mrb[0].mxu0
    %v270 = vadd.f32 0.0, %v269
    %v271 = vpop.f32.mrb[0].mxu0
    %v272 = vpop.f32.mrb[0].mxu0
    %v273 = vpop.f32.mrb[0].mxu0
    %274 = vdwg.mxu0
    %275 = vmatprep.subr.bf16.mxu0 0
    %276 = vmatpush1.bf16.msra.mxu0 %v123
    %277 = vmatprep.subr.bf16.mxu0 0
    %278 = vmatpush1.bf16.msra.mxu0 %v127
    %279 = vmatprep.subr.bf16.mxu0 0
    %280 = vmatpush1.bf16.msra.mxu0 0
    %281 = vmatprep.subr.bf16.mxu0 0
    %282 = vmatpush1.bf16.msra.mxu0 0
    %283 = vmatprep.subr.bf16.mxu0 0
    %284 = vmatpush1.bf16.msra.mxu0 0
    %285 = vmatprep.subr.bf16.mxu0 0
    %286 = vmatpush1.bf16.msra.mxu0 0
    %287 = vmatprep.subr.bf16.mxu0 0
    %288 = vmatpush1.bf16.msra.mxu0 0
    %289 = vmatprep.subr.bf16.mxu0 0
    %290 = vmatpush1.bf16.msra.mxu0 0
    %291 = vmatprep.subr.bf16.mxu0 0
    %292 = vmatpush1.bf16.msra.mxu0 0
    %293 = vmatprep.subr.bf16.mxu0 0
    %294 = vmatpush1.bf16.msra.mxu0 0
    %295 = vmatprep.subr.bf16.mxu0 0
    %296 = vmatpush1.bf16.msra.mxu0 0
    %297 = vmatprep.subr.bf16.mxu0 0
    %298 = vmatpush1.bf16.msra.mxu0 0
    %299 = vmatprep.subr.bf16.mxu0 0
    %300 = vmatpush1.bf16.msra.mxu0 0
    %301 = vmatprep.subr.bf16.mxu0 0
    %302 = vmatpush1.bf16.msra.mxu0 0
    %303 = vmatprep.subr.bf16.mxu0 0
    %304 = vmatpush1.bf16.msra.mxu0 0
    %305 = vmatprep.subr.bf16.mxu0 0
    %306 = vmatpush1.bf16.msra.mxu0 0
    %307 = vmatprep.mubr.bf16.mxu0 0
    %308 = vmatmul.mubr.bf16.gmra.mrb[0].mxu0 %v233
    %v309 = vpop.f32.mrb[0].mxu0
    %v310 = vadd.f32 %v270, %v309
    %v311 = vpop.f32.mrb[0].mxu0
    %v312 = vpop.f32.mrb[0].mxu0
    %v313 = vpop.f32.mrb[0].mxu0
    %314 = vdwg.mxu0
    %315 = vmatprep.subr.bf16.mxu0 0
    %316 = vmatpush1.bf16.msra.mxu0 %v175
    %317 = vmatprep.subr.bf16.mxu0 0
    %318 = vmatpush1.bf16.msra.mxu0 %v179
    %319 = vmatprep.subr.bf16.mxu0 0
    %320 = vmatpush1.bf16.msra.mxu0 0
    %321 = vmatprep.subr.bf16.mxu0 0
    %322 = vmatpush1.bf16.msra.mxu0 0
    %323 = vmatprep.subr.bf16.mxu0 0
    %324 = vmatpush1.bf16.msra.mxu0 0
    %325 = vmatprep.subr.bf16.mxu0 0
    %326 = vmatpush1.bf16.msra.mxu0 0
    %327 = vmatprep.subr.bf16.mxu0 0
    %328 = vmatpush1.bf16.msra.mxu0 0
    %329 = vmatprep.subr.bf16.mxu0 0
    %330 = vmatpush1.bf16.msra.mxu0 0
    %331 = vmatprep.subr.bf16.mxu0 0
    %332 = vmatpush1.bf16.msra.mxu0 0
    %333 = vmatprep.subr.bf16.mxu0 0
    %334 = vmatpush1.bf16.msra.mxu0 0
    %335 = vmatprep.subr.bf16.mxu0 0
    %336 = vmatpush1.bf16.msra.mxu0 0
    %337 = vmatprep.subr.bf16.mxu0 0
    %338 = vmatpush1.bf16.msra.mxu0 0
    %339 = vmatprep.subr.bf16.mxu0 0
    %340 = vmatpush1.bf16.msra.mxu0 0
    %341 = vmatprep.subr.bf16.mxu0 0
    %342 = vmatpush1.bf16.msra.mxu0 0
    %343 = vmatprep.subr.bf16.mxu0 0
    %344 = vmatpush1.bf16.msra.mxu0 0
    %345 = vmatprep.subr.bf16.mxu0 0
    %346 = vmatpush1.bf16.msra.mxu0 0
    %347 = vmatprep.mubr.bf16.mxu0 0
    %348 = vmatmul.mubr.bf16.gmra.mrb[0].mxu0 %v233
    %v349 = vpop.f32.mrb[0].mxu0
    %v350 = vadd.f32 0.0, %v349
    %v351 = vpop.f32.mrb[0].mxu0
    %v352 = vpop.f32.mrb[0].mxu0
    %v353 = vpop.f32.mrb[0].mxu0
    %354 = vdwg.mxu0
    %v355 = vadd.f32 %v310, %v350
    %357 = vrot.lane.b32.xlu0 %v355, 32
    %v358 = vpop.permute.xlu0 %357
    %vm360 = vcmask 517376
    %361 = vst.msk [vmem:[#allocation7] sm:$0x3] %vm360, %v358
    %v362 = vld [vmem:[#allocation2] sm:$0x3]
    %363 = vset.pattern.permute.xlu0 2
    %364 = vperm.xlu0 %363, %v362
    %v365 = vpop.permute.xlu0 %364
    %vm366 = vcmp.eq.s32.totalorder %v40, %v365
    %v367 = vsel %vm366, 1, 0
    %v368 = vcvt.s32.f32 %v367
    %v369 = vpack.c.bf16 %v368, %v368
    %v371 = vsel %vm69, %v369, 0
    %373 = vmatprep.subr.bf16.mxu0 0
    %374 = vmatpush1.bf16.msra.mxu0 %v66
    %375 = vmatprep.subr.bf16.mxu0 0
    %376 = vmatpush1.bf16.msra.mxu0 %v75
    %377 = vmatprep.subr.bf16.mxu0 0
    %378 = vmatpush1.bf16.msra.mxu0 0
    %379 = vmatprep.subr.bf16.mxu0 0
    %380 = vmatpush1.bf16.msra.mxu0 0
    %381 = vmatprep.subr.bf16.mxu0 0
    %382 = vmatpush1.bf16.msra.mxu0 0
    %383 = vmatprep.subr.bf16.mxu0 0
    %384 = vmatpush1.bf16.msra.mxu0 0
    %385 = vmatprep.subr.bf16.mxu0 0
    %386 = vmatpush1.bf16.msra.mxu0 0
    %387 = vmatprep.subr.bf16.mxu0 0
    %388 = vmatpush1.bf16.msra.mxu0 0
    %389 = vmatprep.subr.bf16.mxu0 0
    %390 = vmatpush1.bf16.msra.mxu0 0
    %391 = vmatprep.subr.bf16.mxu0 0
    %392 = vmatpush1.bf16.msra.mxu0 0
    %393 = vmatprep.subr.bf16.mxu0 0
    %394 = vmatpush1.bf16.msra.mxu0 0
    %395 = vmatprep.subr.bf16.mxu0 0
    %396 = vmatpush1.bf16.msra.mxu0 0
    %397 = vmatprep.subr.bf16.mxu0 0
    %398 = vmatpush1.bf16.msra.mxu0 0
    %399 = vmatprep.subr.bf16.mxu0 0
    %400 = vmatpush1.bf16.msra.mxu0 0
    %401 = vmatprep.subr.bf16.mxu0 0
    %402 = vmatpush1.bf16.msra.mxu0 0
    %403 = vmatprep.subr.bf16.mxu0 0
    %404 = vmatpush1.bf16.msra.mxu0 0
    %405 = vmatprep.mubr.bf16.mxu0 0
    %406 = vmatmul.mubr.bf16.gmra.mrb[0].mxu0 %v371
    %v407 = vpop.f32.mrb[0].mxu0
    %v408 = vadd.f32 0.0, %v407
    %v409 = vpop.f32.mrb[0].mxu0
    %v410 = vpop.f32.mrb[0].mxu0
    %v411 = vpop.f32.mrb[0].mxu0
    %412 = vdwg.mxu0
    %413 = vmatprep.subr.bf16.mxu0 0
    %414 = vmatpush1.bf16.msra.mxu0 %v123
    %415 = vmatprep.subr.bf16.mxu0 0
    %416 = vmatpush1.bf16.msra.mxu0 %v127
    %417 = vmatprep.subr.bf16.mxu0 0
    %418 = vmatpush1.bf16.msra.mxu0 0
    %419 = vmatprep.subr.bf16.mxu0 0
    %420 = vmatpush1.bf16.msra.mxu0 0
    %421 = vmatprep.subr.bf16.mxu0 0
    %422 = vmatpush1.bf16.msra.mxu0 0
    %423 = vmatprep.subr.bf16.mxu0 0
    %424 = vmatpush1.bf16.msra.mxu0 0
    %425 = vmatprep.subr.bf16.mxu0 0
    %426 = vmatpush1.bf16.msra.mxu0 0
    %427 = vmatprep.subr.bf16.mxu0 0
    %428 = vmatpush1.bf16.msra.mxu0 0
    %429 = vmatprep.subr.bf16.mxu0 0
    %430 = vmatpush1.bf16.msra.mxu0 0
    %431 = vmatprep.subr.bf16.mxu0 0
    %432 = vmatpush1.bf16.msra.mxu0 0
    %433 = vmatprep.subr.bf16.mxu0 0
    %434 = vmatpush1.bf16.msra.mxu0 0
    %435 = vmatprep.subr.bf16.mxu0 0
    %436 = vmatpush1.bf16.msra.mxu0 0
    %437 = vmatprep.subr.bf16.mxu0 0
    %438 = vmatpush1.bf16.msra.mxu0 0
    %439 = vmatprep.subr.bf16.mxu0 0
    %440 = vmatpush1.bf16.msra.mxu0 0
    %441 = vmatprep.subr.bf16.mxu0 0
    %442 = vmatpush1.bf16.msra.mxu0 0
    %443 = vmatprep.subr.bf16.mxu0 0
    %444 = vmatpush1.bf16.msra.mxu0 0
    %445 = vmatprep.mubr.bf16.mxu0 0
    %446 = vmatmul.mubr.bf16.gmra.mrb[0].mxu0 %v371
    %v447 = vpop.f32.mrb[0].mxu0
    %v448 = vadd.f32 %v408, %v447
    %v449 = vpop.f32.mrb[0].mxu0
    %v450 = vpop.f32.mrb[0].mxu0
    %v451 = vpop.f32.mrb[0].mxu0
    %452 = vdwg.mxu0
    %453 = vmatprep.subr.bf16.mxu0 0
    %454 = vmatpush1.bf16.msra.mxu0 %v175
    %455 = vmatprep.subr.bf16.mxu0 0
    %456 = vmatpush1.bf16.msra.mxu0 %v179
    %457 = vmatprep.subr.bf16.mxu0 0
    %458 = vmatpush1.bf16.msra.mxu0 0
    %459 = vmatprep.subr.bf16.mxu0 0
    %460 = vmatpush1.bf16.msra.mxu0 0
    %461 = vmatprep.subr.bf16.mxu0 0
    %462 = vmatpush1.bf16.msra.mxu0 0
    %463 = vmatprep.subr.bf16.mxu0 0
    %464 = vmatpush1.bf16.msra.mxu0 0
    %465 = vmatprep.subr.bf16.mxu0 0
    %466 = vmatpush1.bf16.msra.mxu0 0
    %467 = vmatprep.subr.bf16.mxu0 0
    %468 = vmatpush1.bf16.msra.mxu0 0
    %469 = vmatprep.subr.bf16.mxu0 0
    %470 = vmatpush1.bf16.msra.mxu0 0
    %471 = vmatprep.subr.bf16.mxu0 0
    %472 = vmatpush1.bf16.msra.mxu0 0
    %473 = vmatprep.subr.bf16.mxu0 0
    %474 = vmatpush1.bf16.msra.mxu0 0
    %475 = vmatprep.subr.bf16.mxu0 0
    %476 = vmatpush1.bf16.msra.mxu0 0
    %477 = vmatprep.subr.bf16.mxu0 0
    %478 = vmatpush1.bf16.msra.mxu0 0
    %479 = vmatprep.subr.bf16.mxu0 0
    %480 = vmatpush1.bf16.msra.mxu0 0
    %481 = vmatprep.subr.bf16.mxu0 0
    %482 = vmatpush1.bf16.msra.mxu0 0
    %483 = vmatprep.subr.bf16.mxu0 0
    %484 = vmatpush1.bf16.msra.mxu0 0
    %485 = vmatprep.mubr.bf16.mxu0 0
    %486 = vmatmul.mubr.bf16.gmra.mrb[0].mxu0 %v371
    %v487 = vpop.f32.mrb[0].mxu0
    %v488 = vadd.f32 0.0, %v487
    %v489 = vpop.f32.mrb[0].mxu0
    %v490 = vpop.f32.mrb[0].mxu0
    %v491 = vpop.f32.mrb[0].mxu0
    %492 = vdwg.mxu0
    %v493 = vadd.f32 %v448, %v488
    %495 = vrot.lane.b32.xlu0 %v493, 64
    %v496 = vpop.permute.xlu0 %495
    %vm498 = vcmask 779776
    %499 = vst.msk [vmem:[#allocation7] sm:$0x3] %vm498, %v496
    %v500 = vld [vmem:[#allocation2] sm:$0x3]
    %501 = vset.pattern.permute.xlu0 3
    %502 = vperm.xlu0 %501, %v500
    %v503 = vpop.permute.xlu0 %502
    %vm504 = vcmp.eq.s32.totalorder %v40, %v503
    %v505 = vsel %vm504, 1, 0
    %v506 = vcvt.s32.f32 %v505
    %v507 = vpack.c.bf16 %v506, %v506
    %v509 = vsel %vm69, %v507, 0
    %511 = vmatprep.subr.bf16.mxu0 0
    %512 = vmatpush1.bf16.msra.mxu0 %v66
    %513 = vmatprep.subr.bf16.mxu0 0
    %514 = vmatpush1.bf16.msra.mxu0 %v75
    %515 = vmatprep.subr.bf16.mxu0 0
    %516 = vmatpush1.bf16.msra.mxu0 0
    %517 = vmatprep.subr.bf16.mxu0 0
    %518 = vmatpush1.bf16.msra.mxu0 0
    %519 = vmatprep.subr.bf16.mxu0 0
    %520 = vmatpush1.bf16.msra.mxu0 0
    %521 = vmatprep.subr.bf16.mxu0 0
    %522 = vmatpush1.bf16.msra.mxu0 0
    %523 = vmatprep.subr.bf16.mxu0 0
    %524 = vmatpush1.bf16.msra.mxu0 0
    %525 = vmatprep.subr.bf16.mxu0 0
    %526 = vmatpush1.bf16.msra.mxu0 0
    %527 = vmatprep.subr.bf16.mxu0 0
    %528 = vmatpush1.bf16.msra.mxu0 0
    %529 = vmatprep.subr.bf16.mxu0 0
    %530 = vmatpush1.bf16.msra.mxu0 0
    %531 = vmatprep.subr.bf16.mxu0 0
    %532 = vmatpush1.bf16.msra.mxu0 0
    %533 = vmatprep.subr.bf16.mxu0 0
    %534 = vmatpush1.bf16.msra.mxu0 0
    %535 = vmatprep.subr.bf16.mxu0 0
    %536 = vmatpush1.bf16.msra.mxu0 0
    %537 = vmatprep.subr.bf16.mxu0 0
    %538 = vmatpush1.bf16.msra.mxu0 0
    %539 = vmatprep.subr.bf16.mxu0 0
    %540 = vmatpush1.bf16.msra.mxu0 0
    %541 = vmatprep.subr.bf16.mxu0 0
    %542 = vmatpush1.bf16.msra.mxu0 0
    %543 = vmatprep.mubr.bf16.mxu0 0
    %544 = vmatmul.mubr.bf16.gmra.mrb[0].mxu0 %v509
    %v545 = vpop.f32.mrb[0].mxu0
    %v546 = vadd.f32 0.0, %v545
    %v547 = vpop.f32.mrb[0].mxu0
    %v548 = vpop.f32.mrb[0].mxu0
    %v549 = vpop.f32.mrb[0].mxu0
    %550 = vdwg.mxu0
    %551 = vmatprep.subr.bf16.mxu0 0
    %552 = vmatpush1.bf16.msra.mxu0 %v123
    %553 = vmatprep.subr.bf16.mxu0 0
    %554 = vmatpush1.bf16.msra.mxu0 %v127
    %555 = vmatprep.subr.bf16.mxu0 0
    %556 = vmatpush1.bf16.msra.mxu0 0
    %557 = vmatprep.subr.bf16.mxu0 0
    %558 = vmatpush1.bf16.msra.mxu0 0
    %559 = vmatprep.subr.bf16.mxu0 0
    %560 = vmatpush1.bf16.msra.mxu0 0
    %561 = vmatprep.subr.bf16.mxu0 0
    %562 = vmatpush1.bf16.msra.mxu0 0
    %563 = vmatprep.subr.bf16.mxu0 0
    %564 = vmatpush1.bf16.msra.mxu0 0
    %565 = vmatprep.subr.bf16.mxu0 0
    %566 = vmatpush1.bf16.msra.mxu0 0
    %567 = vmatprep.subr.bf16.mxu0 0
    %568 = vmatpush1.bf16.msra.mxu0 0
    %569 = vmatprep.subr.bf16.mxu0 0
    %570 = vmatpush1.bf16.msra.mxu0 0
    %571 = vmatprep.subr.bf16.mxu0 0
    %572 = vmatpush1.bf16.msra.mxu0 0
    %573 = vmatprep.subr.bf16.mxu0 0
    %574 = vmatpush1.bf16.msra.mxu0 0
    %575 = vmatprep.subr.bf16.mxu0 0
    %576 = vmatpush1.bf16.msra.mxu0 0
    %577 = vmatprep.subr.bf16.mxu0 0
    %578 = vmatpush1.bf16.msra.mxu0 0
    %579 = vmatprep.subr.bf16.mxu0 0
    %580 = vmatpush1.bf16.msra.mxu0 0
    %581 = vmatprep.subr.bf16.mxu0 0
    %582 = vmatpush1.bf16.msra.mxu0 0
    %583 = vmatprep.mubr.bf16.mxu0 0
    %584 = vmatmul.mubr.bf16.gmra.mrb[0].mxu0 %v509
    %v585 = vpop.f32.mrb[0].mxu0
    %v586 = vadd.f32 %v546, %v585
    %v587 = vpop.f32.mrb[0].mxu0
    %v588 = vpop.f32.mrb[0].mxu0
    %v589 = vpop.f32.mrb[0].mxu0
    %590 = vdwg.mxu0
    %591 = vmatprep.subr.bf16.mxu0 0
    %592 = vmatpush1.bf16.msra.mxu0 %v175
    %593 = vmatprep.subr.bf16.mxu0 0
    %594 = vmatpush1.bf16.msra.mxu0 %v179
    %595 = vmatprep.subr.bf16.mxu0 0
    %596 = vmatpush1.bf16.msra.mxu0 0
    %597 = vmatprep.subr.bf16.mxu0 0
    %598 = vmatpush1.bf16.msra.mxu0 0
    %599 = vmatprep.subr.bf16.mxu0 0
    %600 = vmatpush1.bf16.msra.mxu0 0
    %601 = vmatprep.subr.bf16.mxu0 0
    %602 = vmatpush1.bf16.msra.mxu0 0
    %603 = vmatprep.subr.bf16.mxu0 0
    %604 = vmatpush1.bf16.msra.mxu0 0
    %605 = vmatprep.subr.bf16.mxu0 0
    %606 = vmatpush1.bf16.msra.mxu0 0
    %607 = vmatprep.subr.bf16.mxu0 0
    %608 = vmatpush1.bf16.msra.mxu0 0
    %609 = vmatprep.subr.bf16.mxu0 0
    %610 = vmatpush1.bf16.msra.mxu0 0
    %611 = vmatprep.subr.bf16.mxu0 0
    %612 = vmatpush1.bf16.msra.mxu0 0
    %613 = vmatprep.subr.bf16.mxu0 0
    %614 = vmatpush1.bf16.msra.mxu0 0
    %615 = vmatprep.subr.bf16.mxu0 0
    %616 = vmatpush1.bf16.msra.mxu0 0
    %617 = vmatprep.subr.bf16.mxu0 0
    %618 = vmatpush1.bf16.msra.mxu0 0
    %619 = vmatprep.subr.bf16.mxu0 0
    %620 = vmatpush1.bf16.msra.mxu0 0
    %621 = vmatprep.subr.bf16.mxu0 0
    %622 = vmatpush1.bf16.msra.mxu0 0
    %623 = vmatprep.mubr.bf16.mxu0 0
    %624 = vmatmul.mubr.bf16.gmra.mrb[0].mxu0 %v509
    %v625 = vpop.f32.mrb[0].mxu0
    %v626 = vadd.f32 0.0, %v625
    %v627 = vpop.f32.mrb[0].mxu0
    %v628 = vpop.f32.mrb[0].mxu0
    %v629 = vpop.f32.mrb[0].mxu0
    %630 = vdwg.mxu0
    %v631 = vadd.f32 %v586, %v626
    %633 = vrot.lane.b32.xlu0 %v631, 96
    %v634 = vpop.permute.xlu0 %633
    %vm636 = vcmask 1042176
    %637 = vst.msk [vmem:[#allocation7] sm:$0x3] %vm636, %v634
    // Predicated region
    $region18: #{tpu_custom_call.1} parent=1 // pred_check
      _
    $region19: #{tpu_custom_call.1} parent=1 // pred_check_branch
      %639 = sbr.rel (0) target = $region21
    $region20: #{tpu_custom_call.1} parent=1 // pred_region
      %s641 = ssub.s32 32, 32
      %642 = vsyncadd [#allocation4], %s641
      %s644 = sshll.u32 [#allocation7], 4
      %s645 = int_to_ptr.vmem [resolvable:$true] %s644
      %647 = dma.vmem_to_hbm [thread:$0]  %s645, 32, %s2, [#allocation4]
    $region21: #{tpu_custom_call.1} parent=1 // pred_fallthru
      _
    // Predicated region
    $region22: #{tpu_custom_call.1} parent=1 // pred_check
      _
    $region23: #{tpu_custom_call.1} parent=1 // pred_check_branch
      %649 = sbr.rel (0) target = $region25
    $region24: #{tpu_custom_call.1} parent=1 // pred_region
      %650 = dma.done [#allocation4], 32
    $region25: #{tpu_custom_call.1} parent=1 // pred_fallthru
      _
    %651 = vsyncpa [#allocation3], 1
    %652 = vsyncpa [#allocation6], 1
    %653 = vsyncpa [#allocation4], 1

</llo_original>
